<compile_context>
chip_gen: v7x
topology: tpu7x:2x2x1
jax: 0.10.0
libtpu: 0.0.40
codegen_flags: <defaults>
</compile_context>

<pallas_src>
import functools

import jax
import jax.numpy as jnp
from jax import lax
from jax.experimental import pallas as pl
from jax.experimental.pallas import tpu as pltpu

H = 100          # embedding dim == hidden dim (as in the PyTorch module)
H_PAD = 128      # lane-padded hidden dim
OUT = 2          # fc1 output features
OUT_PAD = 128    # lane-padded output dim


# ----------------------------- Pallas kernel ------------------------------ #
def lstm_mean_fc_kernel(x_ref, wih_ref, whh_ref, b_ref, wfc_ref, bfc_ref,
                        out_ref, h_sc, c_sc, acc_sc, *, inv_t):
    """Grid = (batch_blocks, time_blocks).

    x_ref:   [tile_t, b_tile, H_PAD]  (seq-major embedding block)
    weights: pre-transposed / lane-padded
    out_ref: [b_tile, OUT_PAD]        (written at the last time block)
    """
    t_blk = pl.program_id(1)

    @pl.when(t_blk == 0)
    def _init():                      # new batch block -> reset the recurrence
        h_sc[...] = jnp.zeros_like(h_sc)
        c_sc[...] = jnp.zeros_like(c_sc)
        acc_sc[...] = jnp.zeros_like(acc_sc)

    tile_t, b_tile, hp = x_ref.shape

    # --- input projection for the whole time tile: one big MXU matmul ------
    x_flat = x_ref[...].reshape(tile_t * b_tile, hp)
    gx = jnp.dot(x_flat, wih_ref[...], preferred_element_type=jnp.float32)
    gx = gx + b_ref[...]                       # bias broadcast once per tile
    gx = gx.reshape(tile_t, b_tile, 4 * hp)

    h = h_sc[...]
    c = c_sc[...]
    acc = acc_sc[...]
    whh = whh_ref[...]

    # --- fully-unrolled recurrence: only h @ W_hh on the serial chain ------
    for t in range(tile_t):
        gates = gx[t] + jnp.dot(h, whh, preferred_element_type=jnp.float32)
        i = jax.nn.sigmoid(gates[:, 0 * hp:1 * hp])
        f = jax.nn.sigmoid(gates[:, 1 * hp:2 * hp])
        g = jnp.tanh(gates[:, 2 * hp:3 * hp])
        o = jax.nn.sigmoid(gates[:, 3 * hp:4 * hp])
        c = f * c + i * g
        h = o * jnp.tanh(c)
        acc = acc + h

    h_sc[...] = h
    c_sc[...] = c
    acc_sc[...] = acc

    @pl.when(t_blk == pl.num_programs(1) - 1)
    def _finalize():                  # temporal mean + fc1 fused at the end
        mean_h = acc_sc[...] * inv_t
        out_ref[...] = (jnp.dot(mean_h, wfc_ref[...],
                                preferred_element_type=jnp.float32)
                        + bfc_ref[...])


# ------------------------------ wrapper ----------------------------------- #
def _round_up(x, m):
    return (x + m - 1) // m * m


@jax.jit
def lstm_net_forward(tokens, padded_params):
    """tokens: [B, T] int32  ->  logits [B, 2]."""
    B, T = tokens.shape

    # batch tiling (multiple of 8 sublanes; cap per-block batch at 128)
    b8 = max(8, _round_up(B, 8))
    b_tile = b8 if b8 <= 128 else 128
    b_pad = _round_up(b8, b_tile)

    # time tiling: largest candidate that divides T (no time padding needed)
    tile_t = next(d for d in (16, 8, 4, 2, 1) if T % d == 0)

    # Single gather directly into the lane-padded, seq-major layout.
    # Padded batch rows index the extra all-zero embedding row.
    pad_id = padded_params["emb_p"].shape[0] - 1
    tok_p = jnp.pad(tokens, ((0, b_pad - B), (0, 0)), constant_values=pad_id)
    x_p = padded_params["emb_p"][tok_p.T]                 # [T, b_pad, H_PAD]

    grid = (b_pad // b_tile, T // tile_t)
    kernel = functools.partial(lstm_mean_fc_kernel, inv_t=1.0 / T)

    out_p = pl.pallas_call(
        kernel,
        out_shape=jax.ShapeDtypeStruct((b_pad, OUT_PAD), jnp.float32),
        grid_spec=pltpu.PrefetchScalarGridSpec(
            num_scalar_prefetch=0,
            grid=grid,
            in_specs=[
                pl.BlockSpec((tile_t, b_tile, H_PAD), lambda b, t: (t, b, 0)),
                pl.BlockSpec((H_PAD, 4 * H_PAD), lambda b, t: (0, 0)),
                pl.BlockSpec((H_PAD, 4 * H_PAD), lambda b, t: (0, 0)),
                pl.BlockSpec((1, 4 * H_PAD), lambda b, t: (0, 0)),
                pl.BlockSpec((H_PAD, OUT_PAD), lambda b, t: (0, 0)),
                pl.BlockSpec((1, OUT_PAD), lambda b, t: (0, 0)),
            ],
            out_specs=pl.BlockSpec((b_tile, OUT_PAD), lambda b, t: (b, 0)),
            scratch_shapes=[pltpu.VMEM((b_tile, H_PAD), jnp.float32)] * 3,
        ),
        compiler_params=pltpu.CompilerParams(
            dimension_semantics=("parallel", "arbitrary"),
            vmem_limit_bytes=32 * 1024 * 1024,
        ),
    )(x_p,
      padded_params["wih_p"], padded_params["whh_p"], padded_params["b_p"],
      padded_params["wfc_p"], padded_params["bfc_p"])

    return out_p[:B, :OUT]                                # [B, 2]


# --------------------------- parameter setup ------------------------------ #
def init_raw_params(key, vocab_size):
    ks = jax.random.split(key, 7)
    V = vocab_size + 4
    bound = 1.0 / (H ** 0.5)
    return {
        "emb":  jax.random.normal(ks[0], (V, H), jnp.float32) * 0.1,
        "w_ih": jax.random.uniform(ks[1], (4 * H, H), jnp.float32, -bound, bound),
        "w_hh": jax.random.uniform(ks[2], (4 * H, H), jnp.float32, -bound, bound),
        "b_ih": jax.random.uniform(ks[3], (4 * H,), jnp.float32, -bound, bound),
        "b_hh": jax.random.uniform(ks[4], (4 * H,), jnp.float32, -bound, bound),
        "fc_w": jax.random.uniform(ks[5], (OUT, H), jnp.float32, -bound, bound),
        "fc_b": jax.random.uniform(ks[6], (OUT,), jnp.float32, -bound, bound),
    }


def pad_params(raw):
    """Pack PyTorch-layout weights into lane-padded, pre-transposed matrices.

    Done once at parameter-prep time (not per forward).  The embedding table
    gets an extra all-zero row (index V) used for padded batch entries.
    """
    V = raw["emb"].shape[0]
    emb_p = jnp.zeros((V + 1, H_PAD), jnp.float32).at[:V, :H].set(raw["emb"])

    wih_p = jnp.zeros((H_PAD, 4 * H_PAD), jnp.float32)
    whh_p = jnp.zeros((H_PAD, 4 * H_PAD), jnp.float32)
    b_p = jnp.zeros((1, 4 * H_PAD), jnp.float32)
    for g in range(4):  # PyTorch gate order: i, f, g, o
        wih_p = wih_p.at[:H, g * H_PAD:g * H_PAD + H].set(
            raw["w_ih"][g * H:(g + 1) * H, :].T)
        whh_p = whh_p.at[:H, g * H_PAD:g * H_PAD + H].set(
            raw["w_hh"][g * H:(g + 1) * H, :].T)
        b_p = b_p.at[0, g * H_PAD:g * H_PAD + H].set(
            raw["b_ih"][g * H:(g + 1) * H] + raw["b_hh"][g * H:(g + 1) * H])
    wfc_p = jnp.zeros((H_PAD, OUT_PAD), jnp.float32).at[:H, :OUT].set(raw["fc_w"].T)
    bfc_p = jnp.zeros((1, OUT_PAD), jnp.float32).at[0, :OUT].set(raw["fc_b"])
    return {"emb_p": emb_p, "wih_p": wih_p, "whh_p": whh_p, "b_p": b_p,
            "wfc_p": wfc_p, "bfc_p": bfc_p}


# ------------------------- pure-JAX reference ------------------------------ #
def reference_forward(tokens, raw):
    x = raw["emb"][tokens]                 # [B, T, H]
    x = jnp.transpose(x, (1, 0, 2))        # [T, B, H]
    B = x.shape[1]
    h0 = jnp.zeros((B, H), jnp.float32)
    c0 = jnp.zeros((B, H), jnp.float32)

    def step(carry, x_t):
        h, c = carry
        gates = (x_t @ raw["w_ih"].T + h @ raw["w_hh"].T
                 + raw["b_ih"] + raw["b_hh"])
        i, f, g, o = jnp.split(gates, 4, axis=-1)
        c = jax.nn.sigmoid(f) * c + jax.nn.sigmoid(i) * jnp.tanh(g)
        h = jax.nn.sigmoid(o) * jnp.tanh(c)
        return (h, c), h

    (_, _), hs = lax.scan(step, (h0, c0), x)
    mean_h = hs.mean(axis=0)
    return mean_h @ raw["fc_w"].T + raw["fc_b"]


if __name__ == "__main__":
    vocab_size = 50
    B, T = 2, 24        # T=24 -> tile_t=8, 3 pipelined time blocks

    key = jax.random.PRNGKey(0)
    k_tok, k_par = jax.random.split(key)
    tokens = jax.random.randint(k_tok, (B, T), 0, vocab_size + 4, dtype=jnp.int32)

    raw = init_raw_params(k_par, vocab_size)
    padded = pad_params(raw)

    out = lstm_net_forward(tokens, padded)
    out = jax.block_until_ready(out)

    ref = reference_forward(tokens, raw)
    assert out.shape == (B, OUT)
    assert jnp.allclose(out, ref, atol=1e-4, rtol=1e-4), (out, ref)

    print("KERNEL_OK")
</pallas_src>

<mosaic_0001>
module attributes {stable_mosaic.version = 11 : i64} {
  func.func @lstm_mean_fc_kernel(%arg0: i32, %arg1: i32, %arg2: memref<8x8x128xf32, #tpu.memory_space<vmem>>, %arg3: memref<128x512xf32, #tpu.memory_space<vmem>>, %arg4: memref<128x512xf32, #tpu.memory_space<vmem>>, %arg5: memref<1x512xf32, #tpu.memory_space<vmem>>, %arg6: memref<128x128xf32, #tpu.memory_space<vmem>>, %arg7: memref<1x128xf32, #tpu.memory_space<vmem>>, %arg8: memref<8x128xf32, #tpu.memory_space<vmem>>, %arg9: memref<8x128xf32, #tpu.memory_space<vmem>>, %arg10: memref<8x128xf32, #tpu.memory_space<vmem>>, %arg11: memref<8x128xf32, #tpu.memory_space<vmem>>) attributes {dimension_semantics = [#tpu.dimension_semantics<parallel>, #tpu.dimension_semantics<arbitrary>], iteration_bounds = array<i64: 1, 3>, scalar_prefetch = 0 : i64, scratch_operands = 3 : i64, tpu.core_type = #tpu.core_type<tc>, window_params = [{transform_indices = @transform_0, window_bounds = array<i64: 8, 8, 128>}, {pipeline_mode = #tpu.pipeline_mode<synchronous>, transform_indices = @transform_1, window_bounds = array<i64: 128, 512>}, {pipeline_mode = #tpu.pipeline_mode<synchronous>, transform_indices = @transform_2, window_bounds = array<i64: 128, 512>}, {pipeline_mode = #tpu.pipeline_mode<synchronous>, transform_indices = @transform_3, window_bounds = array<i64: 1, 512>}, {pipeline_mode = #tpu.pipeline_mode<synchronous>, transform_indices = @transform_4, window_bounds = array<i64: 128, 128>}, {pipeline_mode = #tpu.pipeline_mode<synchronous>, transform_indices = @transform_5, window_bounds = array<i64: 1, 128>}, {transform_indices = @transform_6, window_bounds = array<i64: 8, 128>}]} {
    %c0_i32 = arith.constant 0 : i32
    %0 = arith.cmpi eq, %arg1, %c0_i32 : i32
    %1 = arith.extui %0 : i1 to i32
    %c0_i32_0 = arith.constant 0 : i32
    %2 = arith.cmpi ne, %1, %c0_i32_0 : i32
    scf.if %2 {
      %cst_54 = arith.constant 0.000000e+00 : f32
      %261 = vector.broadcast %cst_54 : f32 to vector<8x128xf32>
      %c0_55 = arith.constant 0 : index
      %c0_56 = arith.constant 0 : index
      %262 = vector.load %arg9[%c0_55, %c0_56] : memref<8x128xf32, #tpu.memory_space<vmem>>, vector<8x128xf32>
      tpu.vector_store %arg9[%c0_55, %c0_56], %261 {strides = array<i32>} : memref<8x128xf32, #tpu.memory_space<vmem>>, vector<8x128xf32>,
      %cst_57 = arith.constant 0.000000e+00 : f32
      %263 = vector.broadcast %cst_57 : f32 to vector<8x128xf32>
      %c0_58 = arith.constant 0 : index
      %c0_59 = arith.constant 0 : index
      %264 = vector.load %arg10[%c0_58, %c0_59] : memref<8x128xf32, #tpu.memory_space<vmem>>, vector<8x128xf32>
      tpu.vector_store %arg10[%c0_58, %c0_59], %263 {strides = array<i32>} : memref<8x128xf32, #tpu.memory_space<vmem>>, vector<8x128xf32>,
      %cst_60 = arith.constant 0.000000e+00 : f32
      %265 = vector.broadcast %cst_60 : f32 to vector<8x128xf32>
      %c0_61 = arith.constant 0 : index
      %c0_62 = arith.constant 0 : index
      %266 = vector.load %arg11[%c0_61, %c0_62] : memref<8x128xf32, #tpu.memory_space<vmem>>, vector<8x128xf32>
      tpu.vector_store %arg11[%c0_61, %c0_62], %265 {strides = array<i32>} : memref<8x128xf32, #tpu.memory_space<vmem>>, vector<8x128xf32>,
    } else {
    }
    %c0 = arith.constant 0 : index
    %c0_1 = arith.constant 0 : index
    %c0_2 = arith.constant 0 : index
    %3 = vector.load %arg2[%c0, %c0_1, %c0_2] : memref<8x8x128xf32, #tpu.memory_space<vmem>>, vector<8x8x128xf32>
    %4 = vector.shape_cast %3 : vector<8x8x128xf32> to vector<64x128xf32>
    %c0_3 = arith.constant 0 : index
    %c0_4 = arith.constant 0 : index
    %5 = vector.load %arg3[%c0_3, %c0_4] : memref<128x512xf32, #tpu.memory_space<vmem>>, vector<128x512xf32>
    %cst = arith.constant dense<0.000000e+00> : vector<64x512xf32>
    %6 = tpu.matmul %4, %5, %cst {dimension_numbers = #tpu.dot_dimension_numbers<[1], [0], [0], [1], [0, 0, 1, 1], [], []>} : vector<64x128xf32>, vector<128x512xf32>, vector<64x512xf32> -> vector<64x512xf32>
    %c0_5 = arith.constant 0 : index
    %c0_6 = arith.constant 0 : index
    %7 = vector.load %arg5[%c0_5, %c0_6] : memref<1x512xf32, #tpu.memory_space<vmem>>, vector<1x512xf32>
    %8 = vector.broadcast %7 : vector<1x512xf32> to vector<64x512xf32>
    %9 = arith.addf %6, %8 : vector<64x512xf32>
    %10 = vector.shape_cast %9 : vector<64x512xf32> to vector<8x8x512xf32>
    %c0_7 = arith.constant 0 : index
    %c0_8 = arith.constant 0 : index
    %11 = vector.load %arg9[%c0_7, %c0_8] : memref<8x128xf32, #tpu.memory_space<vmem>>, vector<8x128xf32>
    %c0_9 = arith.constant 0 : index
    %c0_10 = arith.constant 0 : index
    %12 = vector.load %arg10[%c0_9, %c0_10] : memref<8x128xf32, #tpu.memory_space<vmem>>, vector<8x128xf32>
    %c0_11 = arith.constant 0 : index
    %c0_12 = arith.constant 0 : index
    %13 = vector.load %arg11[%c0_11, %c0_12] : memref<8x128xf32, #tpu.memory_space<vmem>>, vector<8x128xf32>
    %c0_13 = arith.constant 0 : index
    %c0_14 = arith.constant 0 : index
    %14 = vector.load %arg4[%c0_13, %c0_14] : memref<128x512xf32, #tpu.memory_space<vmem>>, vector<128x512xf32>
    %15 = vector.extract_strided_slice %10 {offsets = [0, 0, 0], sizes = [1, 8, 512], strides = [1, 1, 1]} : vector<8x8x512xf32> to vector<1x8x512xf32>
    %16 = vector.shape_cast %15 : vector<1x8x512xf32> to vector<8x512xf32>
    %cst_15 = arith.constant dense<0.000000e+00> : vector<8x512xf32>
    %17 = tpu.matmul %11, %14, %cst_15 {dimension_numbers = #tpu.dot_dimension_numbers<[1], [0], [0], [1], [0, 0, 1, 1], [], []>} : vector<8x128xf32>, vector<128x512xf32>, vector<8x512xf32> -> vector<8x512xf32>
    %18 = arith.addf %16, %17 : vector<8x512xf32>
    %19 = vector.extract_strided_slice %18 {offsets = [0, 0], sizes = [8, 128], strides = [1, 1]} : vector<8x512xf32> to vector<8x128xf32>
    %20 = arith.negf %19 : vector<8x128xf32>
    %21 = math.exp %20 : vector<8x128xf32>
    %cst_16 = arith.constant 1.000000e+00 : f32
    %22 = vector.broadcast %cst_16 : f32 to vector<8x128xf32>
    %23 = arith.addf %22, %21 : vector<8x128xf32>
    %24 = arith.divf %22, %23 : vector<8x128xf32>
    %25 = vector.extract_strided_slice %18 {offsets = [0, 128], sizes = [8, 128], strides = [1, 1]} : vector<8x512xf32> to vector<8x128xf32>
    %26 = arith.negf %25 : vector<8x128xf32>
    %27 = math.exp %26 : vector<8x128xf32>
    %cst_17 = arith.constant 1.000000e+00 : f32
    %28 = vector.broadcast %cst_17 : f32 to vector<8x128xf32>
    %29 = arith.addf %28, %27 : vector<8x128xf32>
    %30 = arith.divf %28, %29 : vector<8x128xf32>
    %31 = vector.extract_strided_slice %18 {offsets = [0, 256], sizes = [8, 128], strides = [1, 1]} : vector<8x512xf32> to vector<8x128xf32>
    %32 = math.tanh %31 : vector<8x128xf32>
    %33 = vector.extract_strided_slice %18 {offsets = [0, 384], sizes = [8, 128], strides = [1, 1]} : vector<8x512xf32> to vector<8x128xf32>
    %34 = arith.negf %33 : vector<8x128xf32>
    %35 = math.exp %34 : vector<8x128xf32>
    %cst_18 = arith.constant 1.000000e+00 : f32
    %36 = vector.broadcast %cst_18 : f32 to vector<8x128xf32>
    %37 = arith.addf %36, %35 : vector<8x128xf32>
    %38 = arith.divf %36, %37 : vector<8x128xf32>
    %39 = arith.mulf %30, %12 : vector<8x128xf32>
    %40 = arith.mulf %24, %32 : vector<8x128xf32>
    %41 = arith.addf %39, %40 : vector<8x128xf32>
    %42 = math.tanh %41 : vector<8x128xf32>
    %43 = arith.mulf %38, %42 : vector<8x128xf32>
    %44 = arith.addf %13, %43 : vector<8x128xf32>
    %45 = vector.extract_strided_slice %10 {offsets = [1, 0, 0], sizes = [1, 8, 512], strides = [1, 1, 1]} : vector<8x8x512xf32> to vector<1x8x512xf32>
    %46 = vector.shape_cast %45 : vector<1x8x512xf32> to vector<8x512xf32>
    %cst_19 = arith.constant dense<0.000000e+00> : vector<8x512xf32>
    %47 = tpu.matmul %43, %14, %cst_19 {dimension_numbers = #tpu.dot_dimension_numbers<[1], [0], [0], [1], [0, 0, 1, 1], [], []>} : vector<8x128xf32>, vector<128x512xf32>, vector<8x512xf32> -> vector<8x512xf32>
    %48 = arith.addf %46, %47 : vector<8x512xf32>
    %49 = vector.extract_strided_slice %48 {offsets = [0, 0], sizes = [8, 128], strides = [1, 1]} : vector<8x512xf32> to vector<8x128xf32>
    %50 = arith.negf %49 : vector<8x128xf32>
    %51 = math.exp %50 : vector<8x128xf32>
    %cst_20 = arith.constant 1.000000e+00 : f32
    %52 = vector.broadcast %cst_20 : f32 to vector<8x128xf32>
    %53 = arith.addf %52, %51 : vector<8x128xf32>
    %54 = arith.divf %52, %53 : vector<8x128xf32>
    %55 = vector.extract_strided_slice %48 {offsets = [0, 128], sizes = [8, 128], strides = [1, 1]} : vector<8x512xf32> to vector<8x128xf32>
    %56 = arith.negf %55 : vector<8x128xf32>
    %57 = math.exp %56 : vector<8x128xf32>
    %cst_21 = arith.constant 1.000000e+00 : f32
    %58 = vector.broadcast %cst_21 : f32 to vector<8x128xf32>
    %59 = arith.addf %58, %57 : vector<8x128xf32>
    %60 = arith.divf %58, %59 : vector<8x128xf32>
    %61 = vector.extract_strided_slice %48 {offsets = [0, 256], sizes = [8, 128], strides = [1, 1]} : vector<8x512xf32> to vector<8x128xf32>
    %62 = math.tanh %61 : vector<8x128xf32>
    %63 = vector.extract_strided_slice %48 {offsets = [0, 384], sizes = [8, 128], strides = [1, 1]} : vector<8x512xf32> to vector<8x128xf32>
    %64 = arith.negf %63 : vector<8x128xf32>
    %65 = math.exp %64 : vector<8x128xf32>
    %cst_22 = arith.constant 1.000000e+00 : f32
    %66 = vector.broadcast %cst_22 : f32 to vector<8x128xf32>
    %67 = arith.addf %66, %65 : vector<8x128xf32>
    %68 = arith.divf %66, %67 : vector<8x128xf32>
    %69 = arith.mulf %60, %41 : vector<8x128xf32>
    %70 = arith.mulf %54, %62 : vector<8x128xf32>
    %71 = arith.addf %69, %70 : vector<8x128xf32>
    %72 = math.tanh %71 : vector<8x128xf32>
    %73 = arith.mulf %68, %72 : vector<8x128xf32>
    %74 = arith.addf %44, %73 : vector<8x128xf32>
    %75 = vector.extract_strided_slice %10 {offsets = [2, 0, 0], sizes = [1, 8, 512], strides = [1, 1, 1]} : vector<8x8x512xf32> to vector<1x8x512xf32>
    %76 = vector.shape_cast %75 : vector<1x8x512xf32> to vector<8x512xf32>
    %cst_23 = arith.constant dense<0.000000e+00> : vector<8x512xf32>
    %77 = tpu.matmul %73, %14, %cst_23 {dimension_numbers = #tpu.dot_dimension_numbers<[1], [0], [0], [1], [0, 0, 1, 1], [], []>} : vector<8x128xf32>, vector<128x512xf32>, vector<8x512xf32> -> vector<8x512xf32>
    %78 = arith.addf %76, %77 : vector<8x512xf32>
    %79 = vector.extract_strided_slice %78 {offsets = [0, 0], sizes = [8, 128], strides = [1, 1]} : vector<8x512xf32> to vector<8x128xf32>
    %80 = arith.negf %79 : vector<8x128xf32>
    %81 = math.exp %80 : vector<8x128xf32>
    %cst_24 = arith.constant 1.000000e+00 : f32
    %82 = vector.broadcast %cst_24 : f32 to vector<8x128xf32>
    %83 = arith.addf %82, %81 : vector<8x128xf32>
    %84 = arith.divf %82, %83 : vector<8x128xf32>
    %85 = vector.extract_strided_slice %78 {offsets = [0, 128], sizes = [8, 128], strides = [1, 1]} : vector<8x512xf32> to vector<8x128xf32>
    %86 = arith.negf %85 : vector<8x128xf32>
    %87 = math.exp %86 : vector<8x128xf32>
    %cst_25 = arith.constant 1.000000e+00 : f32
    %88 = vector.broadcast %cst_25 : f32 to vector<8x128xf32>
    %89 = arith.addf %88, %87 : vector<8x128xf32>
    %90 = arith.divf %88, %89 : vector<8x128xf32>
    %91 = vector.extract_strided_slice %78 {offsets = [0, 256], sizes = [8, 128], strides = [1, 1]} : vector<8x512xf32> to vector<8x128xf32>
    %92 = math.tanh %91 : vector<8x128xf32>
    %93 = vector.extract_strided_slice %78 {offsets = [0, 384], sizes = [8, 128], strides = [1, 1]} : vector<8x512xf32> to vector<8x128xf32>
    %94 = arith.negf %93 : vector<8x128xf32>
    %95 = math.exp %94 : vector<8x128xf32>
    %cst_26 = arith.constant 1.000000e+00 : f32
    %96 = vector.broadcast %cst_26 : f32 to vector<8x128xf32>
    %97 = arith.addf %96, %95 : vector<8x128xf32>
    %98 = arith.divf %96, %97 : vector<8x128xf32>
    %99 = arith.mulf %90, %71 : vector<8x128xf32>
    %100 = arith.mulf %84, %92 : vector<8x128xf32>
    %101 = arith.addf %99, %100 : vector<8x128xf32>
    %102 = math.tanh %101 : vector<8x128xf32>
    %103 = arith.mulf %98, %102 : vector<8x128xf32>
    %104 = arith.addf %74, %103 : vector<8x128xf32>
    %105 = vector.extract_strided_slice %10 {offsets = [3, 0, 0], sizes = [1, 8, 512], strides = [1, 1, 1]} : vector<8x8x512xf32> to vector<1x8x512xf32>
    %106 = vector.shape_cast %105 : vector<1x8x512xf32> to vector<8x512xf32>
    %cst_27 = arith.constant dense<0.000000e+00> : vector<8x512xf32>
    %107 = tpu.matmul %103, %14, %cst_27 {dimension_numbers = #tpu.dot_dimension_numbers<[1], [0], [0], [1], [0, 0, 1, 1], [], []>} : vector<8x128xf32>, vector<128x512xf32>, vector<8x512xf32> -> vector<8x512xf32>
    %108 = arith.addf %106, %107 : vector<8x512xf32>
    %109 = vector.extract_strided_slice %108 {offsets = [0, 0], sizes = [8, 128], strides = [1, 1]} : vector<8x512xf32> to vector<8x128xf32>
    %110 = arith.negf %109 : vector<8x128xf32>
    %111 = math.exp %110 : vector<8x128xf32>
    %cst_28 = arith.constant 1.000000e+00 : f32
    %112 = vector.broadcast %cst_28 : f32 to vector<8x128xf32>
    %113 = arith.addf %112, %111 : vector<8x128xf32>
    %114 = arith.divf %112, %113 : vector<8x128xf32>
    %115 = vector.extract_strided_slice %108 {offsets = [0, 128], sizes = [8, 128], strides = [1, 1]} : vector<8x512xf32> to vector<8x128xf32>
    %116 = arith.negf %115 : vector<8x128xf32>
    %117 = math.exp %116 : vector<8x128xf32>
    %cst_29 = arith.constant 1.000000e+00 : f32
    %118 = vector.broadcast %cst_29 : f32 to vector<8x128xf32>
    %119 = arith.addf %118, %117 : vector<8x128xf32>
    %120 = arith.divf %118, %119 : vector<8x128xf32>
    %121 = vector.extract_strided_slice %108 {offsets = [0, 256], sizes = [8, 128], strides = [1, 1]} : vector<8x512xf32> to vector<8x128xf32>
    %122 = math.tanh %121 : vector<8x128xf32>
    %123 = vector.extract_strided_slice %108 {offsets = [0, 384], sizes = [8, 128], strides = [1, 1]} : vector<8x512xf32> to vector<8x128xf32>
    %124 = arith.negf %123 : vector<8x128xf32>
    %125 = math.exp %124 : vector<8x128xf32>
    %cst_30 = arith.constant 1.000000e+00 : f32
    %126 = vector.broadcast %cst_30 : f32 to vector<8x128xf32>
    %127 = arith.addf %126, %125 : vector<8x128xf32>
    %128 = arith.divf %126, %127 : vector<8x128xf32>
    %129 = arith.mulf %120, %101 : vector<8x128xf32>
    %130 = arith.mulf %114, %122 : vector<8x128xf32>
    %131 = arith.addf %129, %130 : vector<8x128xf32>
    %132 = math.tanh %131 : vector<8x128xf32>
    %133 = arith.mulf %128, %132 : vector<8x128xf32>
    %134 = arith.addf %104, %133 : vector<8x128xf32>
    %135 = vector.extract_strided_slice %10 {offsets = [4, 0, 0], sizes = [1, 8, 512], strides = [1, 1, 1]} : vector<8x8x512xf32> to vector<1x8x512xf32>
    %136 = vector.shape_cast %135 : vector<1x8x512xf32> to vector<8x512xf32>
    %cst_31 = arith.constant dense<0.000000e+00> : vector<8x512xf32>
    %137 = tpu.matmul %133, %14, %cst_31 {dimension_numbers = #tpu.dot_dimension_numbers<[1], [0], [0], [1], [0, 0, 1, 1], [], []>} : vector<8x128xf32>, vector<128x512xf32>, vector<8x512xf32> -> vector<8x512xf32>
    %138 = arith.addf %136, %137 : vector<8x512xf32>
    %139 = vector.extract_strided_slice %138 {offsets = [0, 0], sizes = [8, 128], strides = [1, 1]} : vector<8x512xf32> to vector<8x128xf32>
    %140 = arith.negf %139 : vector<8x128xf32>
    %141 = math.exp %140 : vector<8x128xf32>
    %cst_32 = arith.constant 1.000000e+00 : f32
    %142 = vector.broadcast %cst_32 : f32 to vector<8x128xf32>
    %143 = arith.addf %142, %141 : vector<8x128xf32>
    %144 = arith.divf %142, %143 : vector<8x128xf32>
    %145 = vector.extract_strided_slice %138 {offsets = [0, 128], sizes = [8, 128], strides = [1, 1]} : vector<8x512xf32> to vector<8x128xf32>
    %146 = arith.negf %145 : vector<8x128xf32>
    %147 = math.exp %146 : vector<8x128xf32>
    %cst_33 = arith.constant 1.000000e+00 : f32
    %148 = vector.broadcast %cst_33 : f32 to vector<8x128xf32>
    %149 = arith.addf %148, %147 : vector<8x128xf32>
    %150 = arith.divf %148, %149 : vector<8x128xf32>
    %151 = vector.extract_strided_slice %138 {offsets = [0, 256], sizes = [8, 128], strides = [1, 1]} : vector<8x512xf32> to vector<8x128xf32>
    %152 = math.tanh %151 : vector<8x128xf32>
    %153 = vector.extract_strided_slice %138 {offsets = [0, 384], sizes = [8, 128], strides = [1, 1]} : vector<8x512xf32> to vector<8x128xf32>
    %154 = arith.negf %153 : vector<8x128xf32>
    %155 = math.exp %154 : vector<8x128xf32>
    %cst_34 = arith.constant 1.000000e+00 : f32
    %156 = vector.broadcast %cst_34 : f32 to vector<8x128xf32>
    %157 = arith.addf %156, %155 : vector<8x128xf32>
    %158 = arith.divf %156, %157 : vector<8x128xf32>
    %159 = arith.mulf %150, %131 : vector<8x128xf32>
    %160 = arith.mulf %144, %152 : vector<8x128xf32>
    %161 = arith.addf %159, %160 : vector<8x128xf32>
    %162 = math.tanh %161 : vector<8x128xf32>
    %163 = arith.mulf %158, %162 : vector<8x128xf32>
    %164 = arith.addf %134, %163 : vector<8x128xf32>
    %165 = vector.extract_strided_slice %10 {offsets = [5, 0, 0], sizes = [1, 8, 512], strides = [1, 1, 1]} : vector<8x8x512xf32> to vector<1x8x512xf32>
    %166 = vector.shape_cast %165 : vector<1x8x512xf32> to vector<8x512xf32>
    %cst_35 = arith.constant dense<0.000000e+00> : vector<8x512xf32>
    %167 = tpu.matmul %163, %14, %cst_35 {dimension_numbers = #tpu.dot_dimension_numbers<[1], [0], [0], [1], [0, 0, 1, 1], [], []>} : vector<8x128xf32>, vector<128x512xf32>, vector<8x512xf32> -> vector<8x512xf32>
    %168 = arith.addf %166, %167 : vector<8x512xf32>
    %169 = vector.extract_strided_slice %168 {offsets = [0, 0], sizes = [8, 128], strides = [1, 1]} : vector<8x512xf32> to vector<8x128xf32>
    %170 = arith.negf %169 : vector<8x128xf32>
    %171 = math.exp %170 : vector<8x128xf32>
    %cst_36 = arith.constant 1.000000e+00 : f32
    %172 = vector.broadcast %cst_36 : f32 to vector<8x128xf32>
    %173 = arith.addf %172, %171 : vector<8x128xf32>
    %174 = arith.divf %172, %173 : vector<8x128xf32>
    %175 = vector.extract_strided_slice %168 {offsets = [0, 128], sizes = [8, 128], strides = [1, 1]} : vector<8x512xf32> to vector<8x128xf32>
    %176 = arith.negf %175 : vector<8x128xf32>
    %177 = math.exp %176 : vector<8x128xf32>
    %cst_37 = arith.constant 1.000000e+00 : f32
    %178 = vector.broadcast %cst_37 : f32 to vector<8x128xf32>
    %179 = arith.addf %178, %177 : vector<8x128xf32>
    %180 = arith.divf %178, %179 : vector<8x128xf32>
    %181 = vector.extract_strided_slice %168 {offsets = [0, 256], sizes = [8, 128], strides = [1, 1]} : vector<8x512xf32> to vector<8x128xf32>
    %182 = math.tanh %181 : vector<8x128xf32>
    %183 = vector.extract_strided_slice %168 {offsets = [0, 384], sizes = [8, 128], strides = [1, 1]} : vector<8x512xf32> to vector<8x128xf32>
    %184 = arith.negf %183 : vector<8x128xf32>
    %185 = math.exp %184 : vector<8x128xf32>
    %cst_38 = arith.constant 1.000000e+00 : f32
    %186 = vector.broadcast %cst_38 : f32 to vector<8x128xf32>
    %187 = arith.addf %186, %185 : vector<8x128xf32>
    %188 = arith.divf %186, %187 : vector<8x128xf32>
    %189 = arith.mulf %180, %161 : vector<8x128xf32>
    %190 = arith.mulf %174, %182 : vector<8x128xf32>
    %191 = arith.addf %189, %190 : vector<8x128xf32>
    %192 = math.tanh %191 : vector<8x128xf32>
    %193 = arith.mulf %188, %192 : vector<8x128xf32>
    %194 = arith.addf %164, %193 : vector<8x128xf32>
    %195 = vector.extract_strided_slice %10 {offsets = [6, 0, 0], sizes = [1, 8, 512], strides = [1, 1, 1]} : vector<8x8x512xf32> to vector<1x8x512xf32>
    %196 = vector.shape_cast %195 : vector<1x8x512xf32> to vector<8x512xf32>
    %cst_39 = arith.constant dense<0.000000e+00> : vector<8x512xf32>
    %197 = tpu.matmul %193, %14, %cst_39 {dimension_numbers = #tpu.dot_dimension_numbers<[1], [0], [0], [1], [0, 0, 1, 1], [], []>} : vector<8x128xf32>, vector<128x512xf32>, vector<8x512xf32> -> vector<8x512xf32>
    %198 = arith.addf %196, %197 : vector<8x512xf32>
    %199 = vector.extract_strided_slice %198 {offsets = [0, 0], sizes = [8, 128], strides = [1, 1]} : vector<8x512xf32> to vector<8x128xf32>
    %200 = arith.negf %199 : vector<8x128xf32>
    %201 = math.exp %200 : vector<8x128xf32>
    %cst_40 = arith.constant 1.000000e+00 : f32
    %202 = vector.broadcast %cst_40 : f32 to vector<8x128xf32>
    %203 = arith.addf %202, %201 : vector<8x128xf32>
    %204 = arith.divf %202, %203 : vector<8x128xf32>
    %205 = vector.extract_strided_slice %198 {offsets = [0, 128], sizes = [8, 128], strides = [1, 1]} : vector<8x512xf32> to vector<8x128xf32>
    %206 = arith.negf %205 : vector<8x128xf32>
    %207 = math.exp %206 : vector<8x128xf32>
    %cst_41 = arith.constant 1.000000e+00 : f32
    %208 = vector.broadcast %cst_41 : f32 to vector<8x128xf32>
    %209 = arith.addf %208, %207 : vector<8x128xf32>
    %210 = arith.divf %208, %209 : vector<8x128xf32>
    %211 = vector.extract_strided_slice %198 {offsets = [0, 256], sizes = [8, 128], strides = [1, 1]} : vector<8x512xf32> to vector<8x128xf32>
    %212 = math.tanh %211 : vector<8x128xf32>
    %213 = vector.extract_strided_slice %198 {offsets = [0, 384], sizes = [8, 128], strides = [1, 1]} : vector<8x512xf32> to vector<8x128xf32>
    %214 = arith.negf %213 : vector<8x128xf32>
    %215 = math.exp %214 : vector<8x128xf32>
    %cst_42 = arith.constant 1.000000e+00 : f32
    %216 = vector.broadcast %cst_42 : f32 to vector<8x128xf32>
    %217 = arith.addf %216, %215 : vector<8x128xf32>
    %218 = arith.divf %216, %217 : vector<8x128xf32>
    %219 = arith.mulf %210, %191 : vector<8x128xf32>
    %220 = arith.mulf %204, %212 : vector<8x128xf32>
    %221 = arith.addf %219, %220 : vector<8x128xf32>
    %222 = math.tanh %221 : vector<8x128xf32>
    %223 = arith.mulf %218, %222 : vector<8x128xf32>
    %224 = arith.addf %194, %223 : vector<8x128xf32>
    %225 = vector.extract_strided_slice %10 {offsets = [7, 0, 0], sizes = [1, 8, 512], strides = [1, 1, 1]} : vector<8x8x512xf32> to vector<1x8x512xf32>
    %226 = vector.shape_cast %225 : vector<1x8x512xf32> to vector<8x512xf32>
    %cst_43 = arith.constant dense<0.000000e+00> : vector<8x512xf32>
    %227 = tpu.matmul %223, %14, %cst_43 {dimension_numbers = #tpu.dot_dimension_numbers<[1], [0], [0], [1], [0, 0, 1, 1], [], []>} : vector<8x128xf32>, vector<128x512xf32>, vector<8x512xf32> -> vector<8x512xf32>
    %228 = arith.addf %226, %227 : vector<8x512xf32>
    %229 = vector.extract_strided_slice %228 {offsets = [0, 0], sizes = [8, 128], strides = [1, 1]} : vector<8x512xf32> to vector<8x128xf32>
    %230 = arith.negf %229 : vector<8x128xf32>
    %231 = math.exp %230 : vector<8x128xf32>
    %cst_44 = arith.constant 1.000000e+00 : f32
    %232 = vector.broadcast %cst_44 : f32 to vector<8x128xf32>
    %233 = arith.addf %232, %231 : vector<8x128xf32>
    %234 = arith.divf %232, %233 : vector<8x128xf32>
    %235 = vector.extract_strided_slice %228 {offsets = [0, 128], sizes = [8, 128], strides = [1, 1]} : vector<8x512xf32> to vector<8x128xf32>
    %236 = arith.negf %235 : vector<8x128xf32>
    %237 = math.exp %236 : vector<8x128xf32>
    %cst_45 = arith.constant 1.000000e+00 : f32
    %238 = vector.broadcast %cst_45 : f32 to vector<8x128xf32>
    %239 = arith.addf %238, %237 : vector<8x128xf32>
    %240 = arith.divf %238, %239 : vector<8x128xf32>
    %241 = vector.extract_strided_slice %228 {offsets = [0, 256], sizes = [8, 128], strides = [1, 1]} : vector<8x512xf32> to vector<8x128xf32>
    %242 = math.tanh %241 : vector<8x128xf32>
    %243 = vector.extract_strided_slice %228 {offsets = [0, 384], sizes = [8, 128], strides = [1, 1]} : vector<8x512xf32> to vector<8x128xf32>
    %244 = arith.negf %243 : vector<8x128xf32>
    %245 = math.exp %244 : vector<8x128xf32>
    %cst_46 = arith.constant 1.000000e+00 : f32
    %246 = vector.broadcast %cst_46 : f32 to vector<8x128xf32>
    %247 = arith.addf %246, %245 : vector<8x128xf32>
    %248 = arith.divf %246, %247 : vector<8x128xf32>
    %249 = arith.mulf %240, %221 : vector<8x128xf32>
    %250 = arith.mulf %234, %242 : vector<8x128xf32>
    %251 = arith.addf %249, %250 : vector<8x128xf32>
    %252 = math.tanh %251 : vector<8x128xf32>
    %253 = arith.mulf %248, %252 : vector<8x128xf32>
    %254 = arith.addf %224, %253 : vector<8x128xf32>
    %c0_47 = arith.constant 0 : index
    %c0_48 = arith.constant 0 : index
    %255 = vector.load %arg9[%c0_47, %c0_48] : memref<8x128xf32, #tpu.memory_space<vmem>>, vector<8x128xf32>
    tpu.vector_store %arg9[%c0_47, %c0_48], %253 {strides = array<i32>} : memref<8x128xf32, #tpu.memory_space<vmem>>, vector<8x128xf32>,
    %c0_49 = arith.constant 0 : index
    %c0_50 = arith.constant 0 : index
    %256 = vector.load %arg10[%c0_49, %c0_50] : memref<8x128xf32, #tpu.memory_space<vmem>>, vector<8x128xf32>
    tpu.vector_store %arg10[%c0_49, %c0_50], %251 {strides = array<i32>} : memref<8x128xf32, #tpu.memory_space<vmem>>, vector<8x128xf32>,
    %c0_51 = arith.constant 0 : index
    %c0_52 = arith.constant 0 : index
    %257 = vector.load %arg11[%c0_51, %c0_52] : memref<8x128xf32, #tpu.memory_space<vmem>>, vector<8x128xf32>
    tpu.vector_store %arg11[%c0_51, %c0_52], %254 {strides = array<i32>} : memref<8x128xf32, #tpu.memory_space<vmem>>, vector<8x128xf32>,
    %c2_i32 = arith.constant 2 : i32
    %258 = arith.cmpi eq, %arg1, %c2_i32 : i32
    %259 = arith.extui %258 : i1 to i32
    %c0_i32_53 = arith.constant 0 : i32
    %260 = arith.cmpi ne, %259, %c0_i32_53 : i32
    scf.if %260 {
      %c0_54 = arith.constant 0 : index
      %c0_55 = arith.constant 0 : index
      %261 = vector.load %arg11[%c0_54, %c0_55] : memref<8x128xf32, #tpu.memory_space<vmem>>, vector<8x128xf32>
      %cst_56 = arith.constant 0.0416666679 : f32
      %262 = vector.broadcast %cst_56 : f32 to vector<8x128xf32>
      %263 = arith.mulf %261, %262 : vector<8x128xf32>
      %c0_57 = arith.constant 0 : index
      %c0_58 = arith.constant 0 : index
      %264 = vector.load %arg6[%c0_57, %c0_58] : memref<128x128xf32, #tpu.memory_space<vmem>>, vector<128x128xf32>
      %cst_59 = arith.constant dense<0.000000e+00> : vector<8x128xf32>
      %265 = tpu.matmul %263, %264, %cst_59 {dimension_numbers = #tpu.dot_dimension_numbers<[1], [0], [0], [1], [0, 0, 1, 1], [], []>} : vector<8x128xf32>, vector<128x128xf32>, vector<8x128xf32> -> vector<8x128xf32>
      %c0_60 = arith.constant 0 : index
      %c0_61 = arith.constant 0 : index
      %266 = vector.load %arg7[%c0_60, %c0_61] : memref<1x128xf32, #tpu.memory_space<vmem>>, vector<1x128xf32>
      %267 = vector.broadcast %266 : vector<1x128xf32> to vector<8x128xf32>
      %268 = arith.addf %265, %267 : vector<8x128xf32>
      %c0_62 = arith.constant 0 : index
      %c0_63 = arith.constant 0 : index
      %269 = vector.load %arg8[%c0_62, %c0_63] : memref<8x128xf32, #tpu.memory_space<vmem>>, vector<8x128xf32>
      tpu.vector_store %arg8[%c0_62, %c0_63], %268 {strides = array<i32>} : memref<8x128xf32, #tpu.memory_space<vmem>>, vector<8x128xf32>,
    } else {
    }
    return
  }
  func.func @transform_0(%arg0: i32, %arg1: i32) -> (i32, i32, i32) {
    %c0_i32 = arith.constant 0 : i32
    %c0_i32_0 = arith.constant 0 : i32
    return %arg1, %arg0, %c0_i32 : i32, i32, i32
  }
  func.func @transform_1(%arg0: i32, %arg1: i32) -> (i32, i32) {
    %c0_i32 = arith.constant 0 : i32
    %c0_i32_0 = arith.constant 0 : i32
    %c0_i32_1 = arith.constant 0 : i32
    return %c0_i32, %c0_i32_0 : i32, i32
  }
  func.func @transform_2(%arg0: i32, %arg1: i32) -> (i32, i32) {
    %c0_i32 = arith.constant 0 : i32
    %c0_i32_0 = arith.constant 0 : i32
    %c0_i32_1 = arith.constant 0 : i32
    return %c0_i32, %c0_i32_0 : i32, i32
  }
  func.func @transform_3(%arg0: i32, %arg1: i32) -> (i32, i32) {
    %c0_i32 = arith.constant 0 : i32
    %c0_i32_0 = arith.constant 0 : i32
    %c0_i32_1 = arith.constant 0 : i32
    return %c0_i32, %c0_i32_0 : i32, i32
  }
  func.func @transform_4(%arg0: i32, %arg1: i32) -> (i32, i32) {
    %c0_i32 = arith.constant 0 : i32
    %c0_i32_0 = arith.constant 0 : i32
    %c0_i32_1 = arith.constant 0 : i32
    return %c0_i32, %c0_i32_0 : i32, i32
  }
  func.func @transform_5(%arg0: i32, %arg1: i32) -> (i32, i32) {
    %c0_i32 = arith.constant 0 : i32
    %c0_i32_0 = arith.constant 0 : i32
    %c0_i32_1 = arith.constant 0 : i32
    return %c0_i32, %c0_i32_0 : i32, i32
  }
  func.func @transform_6(%arg0: i32, %arg1: i32) -> (i32, i32) {
    %c0_i32 = arith.constant 0 : i32
    %c0_i32_0 = arith.constant 0 : i32
    return %arg0, %c0_i32 : i32, i32
  }
}

</mosaic_0001>

<llo_original>
// kernel: lstm_net_forward.1
$region0: #{lstm_net_forward.1}
  #allocation0 [shape = 'u32[]', space=smem, size = 0x4, offset = 0x4, fixed_abs, tag = 'smem constant byte address 0x4 - core index']
  #allocation1 [shape = 'u32[144,128]{1,0:T(1,128)}', space=vmem, size = 0x12000, scoped, tag = 'internal scratch']
  #allocation2 [shape = 'f32[8,128]{1,0:T(8,128)}', space=vmem, size = 0x1000, scoped, tag = 'scratch operand']
  #allocation3 [shape = 'f32[8,128]{1,0:T(8,128)}', space=vmem, size = 0x1000, scoped, tag = 'scratch operand']
  #allocation4 [shape = 'f32[8,128]{1,0:T(8,128)}', space=vmem, size = 0x1000, scoped, tag = 'scratch operand']
  %s0 = inlined_call_operand.vmem [shape: f32[24,8,128], index: 0, kind: input, shape index: {}]
  %s1 = inlined_call_operand.vmem [shape: f32[128,512], index: 1, kind: input, shape index: {}]
  %s2 = inlined_call_operand.vmem [shape: f32[128,512], index: 2, kind: input, shape index: {}]
  %s3 = inlined_call_operand.vmem [shape: f32[1,512], index: 3, kind: input, shape index: {}]
  %s4 = inlined_call_operand.vmem [shape: f32[128,128], index: 4, kind: input, shape index: {}]
  %s5 = inlined_call_operand.vmem [shape: f32[1,128], index: 5, kind: input, shape index: {}]
  %s6 = inlined_call_operand.vmem [shape: f32[8,128], index: 6, kind: output, shape index: {}]
  %s7 = sld [smem:[#allocation0]]
  $region65: #{lstm_net_forward.1} parent=0
    _
  %s9 = ssub.s32 1, %s7
  %s10 = scalar_select 0, %s9, %s7
  loop: start=0, step=1, limit=5
  $region2: #{lstm_net_forward.1} parent=0 // loop_pre_header
    _
  $region3: #{lstm_net_forward.1} parent=0 // loop_header
    %s12 = sphi 0, %s16
    %p13 = scmp.ge.s32.totalorder %s12, 5
    %s19 = sphi 0, %s31
    %s20 = sphi 0, %s27
    %s21 = sphi 0, %s19
    %s22 = sphi 0, %s20
    %s23 = sphi 0, %s21
    %s24 = sphi 0, %s22
    %s36 = sphi 0, %s38
    %s39 = sphi 0, %s36
    %s40 = sphi 0, %s39
    %s56 = sphi 0, %s40
    %s60 = sphi 0, %s60
    %s62 = sphi 0, %s60
    %s63 = sphi 0, %s62
    %s77 = sphi 0, %s63
    %s81 = sphi 0, %s81
    %s83 = sphi 0, %s81
    %s84 = sphi 0, %s83
    %s98 = sphi 0, %s84
    %s102 = sphi 0, %s102
    %s104 = sphi 0, %s102
    %s105 = sphi 0, %s104
    %s119 = sphi 0, %s105
    %s123 = sphi 0, %s123
    %s125 = sphi 0, %s123
    %s126 = sphi 0, %s125
    %s140 = sphi 0, %s126
    %s144 = sphi 0, %s144
    %s146 = sphi 0, %s144
    %s147 = sphi 0, %s146
    %s161 = sphi 0, %s147
    %s167 = sphi 0, %s169
    %s170 = sphi 0, %s167
    %s171 = sphi 0, %s170
    %s187 = sphi 0, %s171
  $region4: #{lstm_net_forward.1} parent=0 // loop_header_branch
    %15 = sbr.rel (%p13) target = $region8
  $region5: #{lstm_net_forward.1} parent=0 // loop_body
    %s17 = ssub.s32 %s12, 1
    %s18 = ssub.s32 %s12, 2
    %s25 = sadd.s32 1, %s20
    %p26 = scmp.ge.s32.totalorder %s25, 3
    %s27 = scalar_select %p26, 0, %s25
    %s28 = sadd.s32 1, %s19
    %s29 = scalar_select %p26, %s28, %s19
    %p30 = scmp.ge.s32.totalorder %s29, 1
    %s31 = scalar_select %p30, 0, %s29
    %s32 = ssub.s32 %s20, %s27
    %s33 = ssub.s32 %s19, %s31
    %s34 = sor.u32 %s32, %s33
    %p35 = scmp.eq.s32.totalorder %s34, 0
    %s37 = sadd.s32 %s36, 1
    %s38 = scalar_select %p35, %s36, %s37
    %p41 = pneg %p35
    %p42 = scmp.eq.s32.totalorder %s12, 2
    %p43 = por %p41, %p42
    %p44 = scmp.ne.s32.totalorder %s36, %s39
    %p45 = scmp.eq.s32.totalorder %s12, 0
    %p46 = por %p44, %p45
    %p47 = scmp.ne.s32.totalorder %s36, %s39
    %p48 = scmp.eq.s32.totalorder %s17, 2
    %p49 = por %p47, %p48
    %p50 = scmp.ne.s32.totalorder %s39, %s40
    %p51 = scmp.eq.s32.totalorder %s17, 0
    %p52 = por %p50, %p51
    %p53 = scmp.ne.s32.totalorder %s39, %s40
    %p54 = scmp.eq.s32.totalorder %s18, 2
    %p55 = por %p53, %p54
    %p57 = scmp.ne.s32.totalorder %s40, %s56
    %p58 = scmp.eq.s32.totalorder %s18, 0
    %p59 = por %p57, %p58
    %s61 = sadd.s32 %s60, 1
    %p64 = scmp.eq.s32.totalorder %s12, 2
    %p65 = scmp.ne.s32.totalorder %s60, %s62
    %p66 = scmp.eq.s32.totalorder %s12, 0
    %p67 = por %p65, %p66
    %p68 = scmp.ne.s32.totalorder %s60, %s62
    %p69 = scmp.eq.s32.totalorder %s17, 2
    %p70 = por %p68, %p69
    %p71 = scmp.ne.s32.totalorder %s62, %s63
    %p72 = scmp.eq.s32.totalorder %s17, 0
    %p73 = por %p71, %p72
    %p74 = scmp.ne.s32.totalorder %s62, %s63
    %p75 = scmp.eq.s32.totalorder %s18, 2
    %p76 = por %p74, %p75
    %p78 = scmp.ne.s32.totalorder %s63, %s77
    %p79 = scmp.eq.s32.totalorder %s18, 0
    %p80 = por %p78, %p79
    %s82 = sadd.s32 %s81, 1
    %p85 = scmp.eq.s32.totalorder %s12, 2
    %p86 = scmp.ne.s32.totalorder %s81, %s83
    %p87 = scmp.eq.s32.totalorder %s12, 0
    %p88 = por %p86, %p87
    %p89 = scmp.ne.s32.totalorder %s81, %s83
    %p90 = scmp.eq.s32.totalorder %s17, 2
    %p91 = por %p89, %p90
    %p92 = scmp.ne.s32.totalorder %s83, %s84
    %p93 = scmp.eq.s32.totalorder %s17, 0
    %p94 = por %p92, %p93
    %p95 = scmp.ne.s32.totalorder %s83, %s84
    %p96 = scmp.eq.s32.totalorder %s18, 2
    %p97 = por %p95, %p96
    %p99 = scmp.ne.s32.totalorder %s84, %s98
    %p100 = scmp.eq.s32.totalorder %s18, 0
    %p101 = por %p99, %p100
    %s103 = sadd.s32 %s102, 1
    %p106 = scmp.eq.s32.totalorder %s12, 2
    %p107 = scmp.ne.s32.totalorder %s102, %s104
    %p108 = scmp.eq.s32.totalorder %s12, 0
    %p109 = por %p107, %p108
    %p110 = scmp.ne.s32.totalorder %s102, %s104
    %p111 = scmp.eq.s32.totalorder %s17, 2
    %p112 = por %p110, %p111
    %p113 = scmp.ne.s32.totalorder %s104, %s105
    %p114 = scmp.eq.s32.totalorder %s17, 0
    %p115 = por %p113, %p114
    %p116 = scmp.ne.s32.totalorder %s104, %s105
    %p117 = scmp.eq.s32.totalorder %s18, 2
    %p118 = por %p116, %p117
    %p120 = scmp.ne.s32.totalorder %s105, %s119
    %p121 = scmp.eq.s32.totalorder %s18, 0
    %p122 = por %p120, %p121
    %s124 = sadd.s32 %s123, 1
    %p127 = scmp.eq.s32.totalorder %s12, 2
    %p128 = scmp.ne.s32.totalorder %s123, %s125
    %p129 = scmp.eq.s32.totalorder %s12, 0
    %p130 = por %p128, %p129
    %p131 = scmp.ne.s32.totalorder %s123, %s125
    %p132 = scmp.eq.s32.totalorder %s17, 2
    %p133 = por %p131, %p132
    %p134 = scmp.ne.s32.totalorder %s125, %s126
    %p135 = scmp.eq.s32.totalorder %s17, 0
    %p136 = por %p134, %p135
    %p137 = scmp.ne.s32.totalorder %s125, %s126
    %p138 = scmp.eq.s32.totalorder %s18, 2
    %p139 = por %p137, %p138
    %p141 = scmp.ne.s32.totalorder %s126, %s140
    %p142 = scmp.eq.s32.totalorder %s18, 0
    %p143 = por %p141, %p142
    %s145 = sadd.s32 %s144, 1
    %p148 = scmp.eq.s32.totalorder %s12, 2
    %p149 = scmp.ne.s32.totalorder %s144, %s146
    %p150 = scmp.eq.s32.totalorder %s12, 0
    %p151 = por %p149, %p150
    %p152 = scmp.ne.s32.totalorder %s144, %s146
    %p153 = scmp.eq.s32.totalorder %s17, 2
    %p154 = por %p152, %p153
    %p155 = scmp.ne.s32.totalorder %s146, %s147
    %p156 = scmp.eq.s32.totalorder %s17, 0
    %p157 = por %p155, %p156
    %p158 = scmp.ne.s32.totalorder %s146, %s147
    %p159 = scmp.eq.s32.totalorder %s18, 2
    %p160 = por %p158, %p159
    %p162 = scmp.ne.s32.totalorder %s147, %s161
    %p163 = scmp.eq.s32.totalorder %s18, 0
    %p164 = por %p162, %p163
    %s165 = ssub.s32 %s19, %s31
    %p166 = scmp.eq.s32.totalorder %s165, 0
    %s168 = sadd.s32 %s167, 1
    %s169 = scalar_select %p166, %s167, %s168
    %p172 = pneg %p166
    %p173 = scmp.eq.s32.totalorder %s12, 2
    %p174 = por %p172, %p173
    %p175 = scmp.ne.s32.totalorder %s167, %s170
    %p176 = scmp.eq.s32.totalorder %s12, 0
    %p177 = por %p175, %p176
    %p178 = scmp.ne.s32.totalorder %s167, %s170
    %p179 = scmp.eq.s32.totalorder %s17, 2
    %p180 = por %p178, %p179
    %p181 = scmp.ne.s32.totalorder %s170, %s171
    %p182 = scmp.eq.s32.totalorder %s17, 0
    %p183 = por %p181, %p182
    %p184 = scmp.ne.s32.totalorder %s170, %s171
    %p185 = scmp.eq.s32.totalorder %s18, 2
    %p186 = por %p184, %p185
    %p188 = scmp.ne.s32.totalorder %s171, %s187
    %p189 = scmp.eq.s32.totalorder %s18, 0
    %p190 = por %p188, %p189
    %p191 = scmp.le.s32.totalorder 1, %s12
    %p192 = scmp.lt.s32.totalorder %s12, 4
    %p193 = pnand %p191, %p192
    %p194 = pneg %p193
    // Predicated region
    $region9: #{lstm_net_forward.1} parent=5 // pred_check
      _
    $region10: #{lstm_net_forward.1} parent=5 // pred_check_branch
      %196 = sbr.rel (%p193) target = $region12
    $region11: #{lstm_net_forward.1} parent=5 // pred_region
      %s197 = ssub.s32 %s12, 1
      // Predicated region
      $region13: #{lstm_net_forward.1} parent=11 // pred_check
        %p198 = pneg %p73
      $region14: #{lstm_net_forward.1} parent=11 // pred_check_branch
        %200 = sbr.rel (%p198) target = $region16
      $region15: #{lstm_net_forward.1} parent=11 // pred_region
        _
      $region16: #{lstm_net_forward.1} parent=11 // pred_fallthru
        _
      // Predicated region
      $region17: #{lstm_net_forward.1} parent=11 // pred_check
        %p201 = pneg %p94
      $region18: #{lstm_net_forward.1} parent=11 // pred_check_branch
        %203 = sbr.rel (%p201) target = $region20
      $region19: #{lstm_net_forward.1} parent=11 // pred_region
        _
      $region20: #{lstm_net_forward.1} parent=11 // pred_fallthru
        _
      // Predicated region
      $region21: #{lstm_net_forward.1} parent=11 // pred_check
        %p204 = pneg %p115
      $region22: #{lstm_net_forward.1} parent=11 // pred_check_branch
        %206 = sbr.rel (%p204) target = $region24
      $region23: #{lstm_net_forward.1} parent=11 // pred_region
        _
      $region24: #{lstm_net_forward.1} parent=11 // pred_fallthru
        _
      // Predicated region
      $region25: #{lstm_net_forward.1} parent=11 // pred_check
        %p207 = pneg %p136
      $region26: #{lstm_net_forward.1} parent=11 // pred_check_branch
        %209 = sbr.rel (%p207) target = $region28
      $region27: #{lstm_net_forward.1} parent=11 // pred_region
        _
      $region28: #{lstm_net_forward.1} parent=11 // pred_fallthru
        _
      // Predicated region
      $region29: #{lstm_net_forward.1} parent=11 // pred_check
        %p210 = pneg %p157
      $region30: #{lstm_net_forward.1} parent=11 // pred_check_branch
        %212 = sbr.rel (%p210) target = $region32
      $region31: #{lstm_net_forward.1} parent=11 // pred_region
        _
      $region32: #{lstm_net_forward.1} parent=11 // pred_fallthru
        _
    $region12: #{lstm_net_forward.1} parent=5 // pred_fallthru
      _
    %p213 = scmp.lt.s32.totalorder %s12, 3
    // Predicated region
    $region33: #{lstm_net_forward.1} parent=5 // pred_check
      %p214 = pneg %p213
    $region34: #{lstm_net_forward.1} parent=5 // pred_check_branch
      %216 = sbr.rel (%p214) target = $region36
    $region35: #{lstm_net_forward.1} parent=5 // pred_region
      // Predicated region
      $region37: #{lstm_net_forward.1} parent=35 // pred_check
        %p217 = pneg %p46
      $region38: #{lstm_net_forward.1} parent=35 // pred_check_branch
        %219 = sbr.rel (%p217) target = $region40
      $region39: #{lstm_net_forward.1} parent=35 // pred_region
        %s220 = smul.u32 8, %s20
        %p221 = scmp.lt.s32.totalorder %s220, 23
        %s222 = scalar_select %p221, %s220, 23
        %p223 = scmp.lt.s32.totalorder %s19, 0
        %s224 = scalar_select %p223, %s19, 0
        %s225 = sadd.s32 %s224, %s222
        %s226 = smul.addr %s225, 8
        %s227 = scalar_lea.vmem %s0, %s226
        %s228 = smul.u32 8, %s20
      $region40: #{lstm_net_forward.1} parent=35 // pred_fallthru
        _
    $region36: #{lstm_net_forward.1} parent=5 // pred_fallthru
      _
    %p229 = scmp.le.s32.totalorder 1, %s12
    %p230 = scmp.lt.s32.totalorder %s12, 4
    %p231 = pnand %p229, %p230
    %p232 = pneg %p231
    // Predicated region
    $region41: #{lstm_net_forward.1} parent=5 // pred_check
      _
    $region42: #{lstm_net_forward.1} parent=5 // pred_check_branch
      %234 = sbr.rel (%p231) target = $region44
    $region43: #{lstm_net_forward.1} parent=5 // pred_region
      %s235 = ssub.s32 %s12, 1
      %s236 = smul.u32 8, %s22
      %p237 = scmp.lt.s32.totalorder %s236, 23
      %s238 = scalar_select %p237, %s236, 23
      %p239 = scmp.lt.s32.totalorder %s21, 0
      %s240 = scalar_select %p239, %s21, 0
      %s241 = sadd.s32 %s240, %s238
      %s242 = smul.addr %s241, 8
      %s243 = scalar_lea.vmem %s0, %s242
      %p244 = pneg %p52
      %p245 = pneg %p49
      %p246 = pneg %p73
      %p247 = pneg %p70
      %p248 = pneg %p94
      %p249 = pneg %p91
      %p250 = pneg %p115
      %p251 = pneg %p112
      %p252 = pneg %p136
      %p253 = pneg %p133
      %p254 = pneg %p157
      %p255 = pneg %p154
      %p256 = pneg %p183
      %p257 = pneg %p180
      %p258 = scmp.lt.s32.totalorder %s21, 0
      %s259 = scalar_select %p258, %s21, 0
      %s260 = smul.addr %s259, 8
      %s261 = scalar_lea.vmem %s6, %s260
      %s262 = smul.u32 8, %s22
      %p263 = scmp.lt.s32.totalorder %s262, 23
      %s264 = scalar_select %p263, %s262, 23
      %p265 = scmp.lt.s32.totalorder %s21, 0
      %s266 = scalar_select %p265, %s21, 0
      %s267 = sadd.s32 %s266, %s264
      %s268 = smul.addr %s267, 8
      %s269 = scalar_lea.vmem %s0, %s268
      %s270 = smul.u32 8, %s22
      %p271 = scmp.lt.s32.totalorder %s21, 0
      %s272 = scalar_select %p271, %s21, 0
      %s273 = smul.addr %s272, 8
      %s274 = scalar_lea.vmem %s6, %s273
      %p275 = scmp.eq.s32.totalorder %s22, 0
      // Predicated region
      $region45: #{lstm_net_forward.1} parent=43 // pred_check
        %p276 = pneg %p275
      $region46: #{lstm_net_forward.1} parent=43 // pred_check_branch
        %278 = sbr.rel (%p276) target = $region48
      $region47: #{lstm_net_forward.1} parent=43 // pred_region
        %279 = vst [vmem:[#allocation2] sm:$0xff] 0.0
        %280 = vst [vmem:[#allocation3] sm:$0xff] 0.0
        %281 = vst [vmem:[#allocation4] sm:$0xff] 0.0
      $region48: #{lstm_net_forward.1} parent=43 // pred_fallthru
        _
      %v282 = vld [vmem:[%s269] sm:$0xff]
      %v283 = vld [vmem:[%s269 + $0x8] sm:$0xff]
      %v284 = vld [vmem:[%s269 + $0x10] sm:$0xff]
      %v285 = vld [vmem:[%s269 + $0x18] sm:$0xff]
      %v286 = vld [vmem:[%s269 + $0x20] sm:$0xff]
      %v287 = vld [vmem:[%s269 + $0x28] sm:$0xff]
      %v288 = vld [vmem:[%s269 + $0x30] sm:$0xff]
      %v289 = vld [vmem:[%s269 + $0x38] sm:$0xff]
      %v290 = vld [vmem:[%s1] sm:$0xff]
      %v291 = vld [vmem:[%s1 + $0x8] sm:$0xff]
      %v292 = vld [vmem:[%s1 + $0x10] sm:$0xff]
      %v293 = vld [vmem:[%s1 + $0x18] sm:$0xff]
      %v294 = vld [vmem:[%s1 + $0x20] sm:$0xff]
      %v295 = vld [vmem:[%s1 + $0x28] sm:$0xff]
      %v296 = vld [vmem:[%s1 + $0x30] sm:$0xff]
      %v297 = vld [vmem:[%s1 + $0x38] sm:$0xff]
      %v298 = vld [vmem:[%s1 + $0x40] sm:$0xff]
      %v299 = vld [vmem:[%s1 + $0x48] sm:$0xff]
      %v300 = vld [vmem:[%s1 + $0x50] sm:$0xff]
      %v301 = vld [vmem:[%s1 + $0x58] sm:$0xff]
      %v302 = vld [vmem:[%s1 + $0x60] sm:$0xff]
      %v303 = vld [vmem:[%s1 + $0x68] sm:$0xff]
      %v304 = vld [vmem:[%s1 + $0x70] sm:$0xff]
      %v305 = vld [vmem:[%s1 + $0x78] sm:$0xff]
      %v306 = vld [vmem:[%s1 + $0x80] sm:$0xff]
      %v307 = vld [vmem:[%s1 + $0x88] sm:$0xff]
      %v308 = vld [vmem:[%s1 + $0x90] sm:$0xff]
      %v309 = vld [vmem:[%s1 + $0x98] sm:$0xff]
      %v310 = vld [vmem:[%s1 + $0xa0] sm:$0xff]
      %v311 = vld [vmem:[%s1 + $0xa8] sm:$0xff]
      %v312 = vld [vmem:[%s1 + $0xb0] sm:$0xff]
      %v313 = vld [vmem:[%s1 + $0xb8] sm:$0xff]
      %v314 = vld [vmem:[%s1 + $0xc0] sm:$0xff]
      %v315 = vld [vmem:[%s1 + $0xc8] sm:$0xff]
      %v316 = vld [vmem:[%s1 + $0xd0] sm:$0xff]
      %v317 = vld [vmem:[%s1 + $0xd8] sm:$0xff]
      %v318 = vld [vmem:[%s1 + $0xe0] sm:$0xff]
      %v319 = vld [vmem:[%s1 + $0xe8] sm:$0xff]
      %v320 = vld [vmem:[%s1 + $0xf0] sm:$0xff]
      %v321 = vld [vmem:[%s1 + $0xf8] sm:$0xff]
      %v322 = vld [vmem:[%s1 + $0x100] sm:$0xff]
      %v323 = vld [vmem:[%s1 + $0x108] sm:$0xff]
      %v324 = vld [vmem:[%s1 + $0x110] sm:$0xff]
      %v325 = vld [vmem:[%s1 + $0x118] sm:$0xff]
      %v326 = vld [vmem:[%s1 + $0x120] sm:$0xff]
      %v327 = vld [vmem:[%s1 + $0x128] sm:$0xff]
      %v328 = vld [vmem:[%s1 + $0x130] sm:$0xff]
      %v329 = vld [vmem:[%s1 + $0x138] sm:$0xff]
      %v330 = vld [vmem:[%s1 + $0x140] sm:$0xff]
      %v331 = vld [vmem:[%s1 + $0x148] sm:$0xff]
      %v332 = vld [vmem:[%s1 + $0x150] sm:$0xff]
      %v333 = vld [vmem:[%s1 + $0x158] sm:$0xff]
      %v334 = vld [vmem:[%s1 + $0x160] sm:$0xff]
      %v335 = vld [vmem:[%s1 + $0x168] sm:$0xff]
      %v336 = vld [vmem:[%s1 + $0x170] sm:$0xff]
      %v337 = vld [vmem:[%s1 + $0x178] sm:$0xff]
      %v338 = vld [vmem:[%s1 + $0x180] sm:$0xff]
      %v339 = vld [vmem:[%s1 + $0x188] sm:$0xff]
      %v340 = vld [vmem:[%s1 + $0x190] sm:$0xff]
      %v341 = vld [vmem:[%s1 + $0x198] sm:$0xff]
      %v342 = vld [vmem:[%s1 + $0x1a0] sm:$0xff]
      %v343 = vld [vmem:[%s1 + $0x1a8] sm:$0xff]
      %v344 = vld [vmem:[%s1 + $0x1b0] sm:$0xff]
      %v345 = vld [vmem:[%s1 + $0x1b8] sm:$0xff]
      %v346 = vld [vmem:[%s1 + $0x1c0] sm:$0xff]
      %v347 = vld [vmem:[%s1 + $0x1c8] sm:$0xff]
      %v348 = vld [vmem:[%s1 + $0x1d0] sm:$0xff]
      %v349 = vld [vmem:[%s1 + $0x1d8] sm:$0xff]
      %v350 = vld [vmem:[%s1 + $0x1e0] sm:$0xff]
      %v351 = vld [vmem:[%s1 + $0x1e8] sm:$0xff]
      %v352 = vld [vmem:[%s1 + $0x1f0] sm:$0xff]
      %v353 = vld [vmem:[%s1 + $0x1f8] sm:$0xff]
      %v354 = vld [vmem:[%s3] sm:$0xf]
      %v356 = vlaneseq
      %v357 = vshrl.u32 %v356, 7
      %v358 = vsub.s32 0, %v357
      %v359 = vrot.slane %v354, %v358
      %v360 = vlaneseq
      %v361 = vshrl.u32 %v360, 7
      %v362 = vsub.s32 1, %v361
      %v363 = vrot.slane %v354, %v362
      %v364 = vlaneseq
      %v365 = vshrl.u32 %v364, 7
      %v366 = vsub.s32 2, %v365
      %v367 = vrot.slane %v354, %v366
      %v368 = vlaneseq
      %v369 = vshrl.u32 %v368, 7
      %v370 = vsub.s32 3, %v369
      %v371 = vrot.slane %v354, %v370
      %376 = vmatprep.subr.mxu0 %v291
      %377 = vmatpush1.msra.mxu0 %v290
      %378 = vmatprep.subr.mxu0 %v295
      %379 = vmatpush1.msra.mxu0 %v294
      %380 = vmatprep.subr.mxu0 %v299
      %381 = vmatpush1.msra.mxu0 %v298
      %382 = vmatprep.subr.mxu0 %v303
      %383 = vmatpush1.msra.mxu0 %v302
      %384 = vmatprep.subr.mxu0 %v307
      %385 = vmatpush1.msra.mxu0 %v306
      %386 = vmatprep.subr.mxu0 %v311
      %387 = vmatpush1.msra.mxu0 %v310
      %388 = vmatprep.subr.mxu0 %v315
      %389 = vmatpush1.msra.mxu0 %v314
      %390 = vmatprep.subr.mxu0 %v319
      %391 = vmatpush1.msra.mxu0 %v318
      %392 = vmatprep.subr.mxu0 %v323
      %393 = vmatpush1.msra.mxu0 %v322
      %394 = vmatprep.subr.mxu0 %v327
      %395 = vmatpush1.msra.mxu0 %v326
      %396 = vmatprep.subr.mxu0 %v331
      %397 = vmatpush1.msra.mxu0 %v330
      %398 = vmatprep.subr.mxu0 %v335
      %399 = vmatpush1.msra.mxu0 %v334
      %400 = vmatprep.subr.mxu0 %v339
      %401 = vmatpush1.msra.mxu0 %v338
      %402 = vmatprep.subr.mxu0 %v343
      %403 = vmatpush1.msra.mxu0 %v342
      %404 = vmatprep.subr.mxu0 %v347
      %405 = vmatpush1.msra.mxu0 %v346
      %406 = vmatprep.subr.mxu0 %v351
      %407 = vmatpush1.msra.mxu0 %v350
      %408 = vmatprep.subr.mxu0 0.0
      %409 = vmatpush1.msra.mxu0 0.0
      %410 = vmatprep.subr.mxu0 0.0
      %411 = vmatpush1.msra.mxu0 0.0
      %412 = vmatprep.subr.mxu0 0.0
      %413 = vmatpush1.msra.mxu0 0.0
      %414 = vmatprep.subr.mxu0 0.0
      %415 = vmatpush1.msra.mxu0 0.0
      %416 = vmatprep.subr.mxu0 0.0
      %417 = vmatpush1.msra.mxu0 0.0
      %418 = vmatprep.subr.mxu0 0.0
      %419 = vmatpush1.msra.mxu0 0.0
      %420 = vmatprep.subr.mxu0 0.0
      %421 = vmatpush1.msra.mxu0 0.0
      %422 = vmatprep.subr.mxu0 0.0
      %423 = vmatpush1.msra.mxu0 0.0
      %424 = vmatprep.subr.mxu0 0.0
      %425 = vmatpush1.msra.mxu0 0.0
      %426 = vmatprep.subr.mxu0 0.0
      %427 = vmatpush1.msra.mxu0 0.0
      %428 = vmatprep.subr.mxu0 0.0
      %429 = vmatpush1.msra.mxu0 0.0
      %430 = vmatprep.subr.mxu0 0.0
      %431 = vmatpush1.msra.mxu0 0.0
      %432 = vmatprep.subr.mxu0 0.0
      %433 = vmatpush1.msra.mxu0 0.0
      %434 = vmatprep.subr.mxu0 0.0
      %435 = vmatpush1.msra.mxu0 0.0
      %436 = vmatprep.subr.mxu0 0.0
      %437 = vmatpush1.msra.mxu0 0.0
      %438 = vmatprep.subr.mxu0 0.0
      %439 = vmatpush1.msra.mxu0 0.0
      %440 = vmatprep.mubr.f32.mxu0 0.0
      %441 = vmatmul.mubr.f32.gmra.mrb[0].mxu0 %v282
      %v442 = vpop.f32.mrb[0].mxu0
      %v443 = vadd.f32 %v359, %v442
      %v444 = vpop.f32.mrb[0].mxu0
      %v445 = vadd.f32 %v363, %v444
      %446 = vmatprep.mubr.f32.mxu0 0.0
      %447 = vmatmul.mubr.f32.gmra.mrb[0].mxu0 %v283
      %v448 = vpop.f32.mrb[0].mxu0
      %v449 = vadd.f32 %v359, %v448
      %v450 = vpop.f32.mrb[0].mxu0
      %v451 = vadd.f32 %v363, %v450
      %452 = vmatprep.mubr.f32.mxu0 0.0
      %453 = vmatmul.mubr.f32.gmra.mrb[0].mxu0 %v284
      %v454 = vpop.f32.mrb[0].mxu0
      %v455 = vadd.f32 %v359, %v454
      %v456 = vpop.f32.mrb[0].mxu0
      %v457 = vadd.f32 %v363, %v456
      %458 = vmatprep.mubr.f32.mxu0 0.0
      %459 = vmatmul.mubr.f32.gmra.mrb[0].mxu0 %v285
      %v460 = vpop.f32.mrb[0].mxu0
      %v461 = vadd.f32 %v359, %v460
      %v462 = vpop.f32.mrb[0].mxu0
      %v463 = vadd.f32 %v363, %v462
      %464 = vmatprep.mubr.f32.mxu0 0.0
      %465 = vmatmul.mubr.f32.gmra.mrb[0].mxu0 %v286
      %v466 = vpop.f32.mrb[0].mxu0
      %v467 = vadd.f32 %v359, %v466
      %v468 = vpop.f32.mrb[0].mxu0
      %v469 = vadd.f32 %v363, %v468
      %470 = vmatprep.mubr.f32.mxu0 0.0
      %471 = vmatmul.mubr.f32.gmra.mrb[0].mxu0 %v287
      %v472 = vpop.f32.mrb[0].mxu0
      %v473 = vadd.f32 %v359, %v472
      %v474 = vpop.f32.mrb[0].mxu0
      %v475 = vadd.f32 %v363, %v474
      %476 = vmatprep.mubr.f32.mxu0 0.0
      %477 = vmatmul.mubr.f32.gmra.mrb[0].mxu0 %v288
      %v478 = vpop.f32.mrb[0].mxu0
      %v479 = vadd.f32 %v359, %v478
      %v480 = vpop.f32.mrb[0].mxu0
      %v481 = vadd.f32 %v363, %v480
      %482 = vmatprep.mubr.f32.mxu0 0.0
      %483 = vmatmul.mubr.f32.gmra.mrb[0].mxu0 %v289
      %v484 = vpop.f32.mrb[0].mxu0
      %v485 = vadd.f32 %v359, %v484
      %v486 = vpop.f32.mrb[0].mxu0
      %v487 = vadd.f32 %v363, %v486
      %488 = vdwg.mxu0
      %489 = vmatprep.subr.mxu0 %v293
      %490 = vmatpush1.msra.mxu0 %v292
      %491 = vmatprep.subr.mxu0 %v297
      %492 = vmatpush1.msra.mxu0 %v296
      %493 = vmatprep.subr.mxu0 %v301
      %494 = vmatpush1.msra.mxu0 %v300
      %495 = vmatprep.subr.mxu0 %v305
      %496 = vmatpush1.msra.mxu0 %v304
      %497 = vmatprep.subr.mxu0 %v309
      %498 = vmatpush1.msra.mxu0 %v308
      %499 = vmatprep.subr.mxu0 %v313
      %500 = vmatpush1.msra.mxu0 %v312
      %501 = vmatprep.subr.mxu0 %v317
      %502 = vmatpush1.msra.mxu0 %v316
      %503 = vmatprep.subr.mxu0 %v321
      %504 = vmatpush1.msra.mxu0 %v320
      %505 = vmatprep.subr.mxu0 %v325
      %506 = vmatpush1.msra.mxu0 %v324
      %507 = vmatprep.subr.mxu0 %v329
      %508 = vmatpush1.msra.mxu0 %v328
      %509 = vmatprep.subr.mxu0 %v333
      %510 = vmatpush1.msra.mxu0 %v332
      %511 = vmatprep.subr.mxu0 %v337
      %512 = vmatpush1.msra.mxu0 %v336
      %513 = vmatprep.subr.mxu0 %v341
      %514 = vmatpush1.msra.mxu0 %v340
      %515 = vmatprep.subr.mxu0 %v345
      %516 = vmatpush1.msra.mxu0 %v344
      %517 = vmatprep.subr.mxu0 %v349
      %518 = vmatpush1.msra.mxu0 %v348
      %519 = vmatprep.subr.mxu0 %v353
      %520 = vmatpush1.msra.mxu0 %v352
      %521 = vmatprep.subr.mxu0 0.0
      %522 = vmatpush1.msra.mxu0 0.0
      %523 = vmatprep.subr.mxu0 0.0
      %524 = vmatpush1.msra.mxu0 0.0
      %525 = vmatprep.subr.mxu0 0.0
      %526 = vmatpush1.msra.mxu0 0.0
      %527 = vmatprep.subr.mxu0 0.0
      %528 = vmatpush1.msra.mxu0 0.0
      %529 = vmatprep.subr.mxu0 0.0
      %530 = vmatpush1.msra.mxu0 0.0
      %531 = vmatprep.subr.mxu0 0.0
      %532 = vmatpush1.msra.mxu0 0.0
      %533 = vmatprep.subr.mxu0 0.0
      %534 = vmatpush1.msra.mxu0 0.0
      %535 = vmatprep.subr.mxu0 0.0
      %536 = vmatpush1.msra.mxu0 0.0
      %537 = vmatprep.subr.mxu0 0.0
      %538 = vmatpush1.msra.mxu0 0.0
      %539 = vmatprep.subr.mxu0 0.0
      %540 = vmatpush1.msra.mxu0 0.0
      %541 = vmatprep.subr.mxu0 0.0
      %542 = vmatpush1.msra.mxu0 0.0
      %543 = vmatprep.subr.mxu0 0.0
      %544 = vmatpush1.msra.mxu0 0.0
      %545 = vmatprep.subr.mxu0 0.0
      %546 = vmatpush1.msra.mxu0 0.0
      %547 = vmatprep.subr.mxu0 0.0
      %548 = vmatpush1.msra.mxu0 0.0
      %549 = vmatprep.subr.mxu0 0.0
      %550 = vmatpush1.msra.mxu0 0.0
      %551 = vmatprep.subr.mxu0 0.0
      %552 = vmatpush1.msra.mxu0 0.0
      %553 = vmatprep.mubr.f32.mxu0 0.0
      %554 = vmatmul.mubr.f32.gmra.mrb[0].mxu0 %v282
      %v555 = vpop.f32.mrb[0].mxu0
      %v556 = vadd.f32 %v367, %v555
      %v557 = vpop.f32.mrb[0].mxu0
      %v558 = vadd.f32 %v371, %v557
      %559 = vmatprep.mubr.f32.mxu0 0.0
      %560 = vmatmul.mubr.f32.gmra.mrb[0].mxu0 %v283
      %v561 = vpop.f32.mrb[0].mxu0
      %v562 = vadd.f32 %v367, %v561
      %v563 = vpop.f32.mrb[0].mxu0
      %v564 = vadd.f32 %v371, %v563
      %565 = vmatprep.mubr.f32.mxu0 0.0
      %566 = vmatmul.mubr.f32.gmra.mrb[0].mxu0 %v284
      %v567 = vpop.f32.mrb[0].mxu0
      %v568 = vadd.f32 %v367, %v567
      %v569 = vpop.f32.mrb[0].mxu0
      %v570 = vadd.f32 %v371, %v569
      %571 = vmatprep.mubr.f32.mxu0 0.0
      %572 = vmatmul.mubr.f32.gmra.mrb[0].mxu0 %v285
      %v573 = vpop.f32.mrb[0].mxu0
      %v574 = vadd.f32 %v367, %v573
      %v575 = vpop.f32.mrb[0].mxu0
      %v576 = vadd.f32 %v371, %v575
      %577 = vmatprep.mubr.f32.mxu0 0.0
      %578 = vmatmul.mubr.f32.gmra.mrb[0].mxu0 %v286
      %v579 = vpop.f32.mrb[0].mxu0
      %v580 = vadd.f32 %v367, %v579
      %v581 = vpop.f32.mrb[0].mxu0
      %v582 = vadd.f32 %v371, %v581
      %583 = vmatprep.mubr.f32.mxu0 0.0
      %584 = vmatmul.mubr.f32.gmra.mrb[0].mxu0 %v287
      %v585 = vpop.f32.mrb[0].mxu0
      %v586 = vadd.f32 %v367, %v585
      %v587 = vpop.f32.mrb[0].mxu0
      %v588 = vadd.f32 %v371, %v587
      %589 = vmatprep.mubr.f32.mxu0 0.0
      %590 = vmatmul.mubr.f32.gmra.mrb[0].mxu0 %v288
      %v591 = vpop.f32.mrb[0].mxu0
      %v592 = vadd.f32 %v367, %v591
      %v593 = vpop.f32.mrb[0].mxu0
      %v594 = vadd.f32 %v371, %v593
      %595 = vmatprep.mubr.f32.mxu0 0.0
      %596 = vmatmul.mubr.f32.gmra.mrb[0].mxu0 %v289
      %v597 = vpop.f32.mrb[0].mxu0
      %v598 = vadd.f32 %v367, %v597
      %v599 = vpop.f32.mrb[0].mxu0
      %v600 = vadd.f32 %v371, %v599
      %601 = vdwg.mxu0
      %v602 = vld [vmem:[#allocation2] sm:$0xff]
      %v603 = vld [vmem:[#allocation3] sm:$0xff]
      %v604 = vld [vmem:[#allocation4] sm:$0xff]
      %v605 = vld [vmem:[%s2] sm:$0xff]
      %v606 = vld [vmem:[%s2 + $0x8] sm:$0xff]
      %v607 = vld [vmem:[%s2 + $0x10] sm:$0xff]
      %v608 = vld [vmem:[%s2 + $0x18] sm:$0xff]
      %v609 = vld [vmem:[%s2 + $0x20] sm:$0xff]
      %v610 = vld [vmem:[%s2 + $0x28] sm:$0xff]
      %v611 = vld [vmem:[%s2 + $0x30] sm:$0xff]
      %v612 = vld [vmem:[%s2 + $0x38] sm:$0xff]
      %v613 = vld [vmem:[%s2 + $0x40] sm:$0xff]
      %v614 = vld [vmem:[%s2 + $0x48] sm:$0xff]
      %v615 = vld [vmem:[%s2 + $0x50] sm:$0xff]
      %v616 = vld [vmem:[%s2 + $0x58] sm:$0xff]
      %v617 = vld [vmem:[%s2 + $0x60] sm:$0xff]
      %v618 = vld [vmem:[%s2 + $0x68] sm:$0xff]
      %v619 = vld [vmem:[%s2 + $0x70] sm:$0xff]
      %v620 = vld [vmem:[%s2 + $0x78] sm:$0xff]
      %v621 = vld [vmem:[%s2 + $0x80] sm:$0xff]
      %v622 = vld [vmem:[%s2 + $0x88] sm:$0xff]
      %v623 = vld [vmem:[%s2 + $0x90] sm:$0xff]
      %v624 = vld [vmem:[%s2 + $0x98] sm:$0xff]
      %v625 = vld [vmem:[%s2 + $0xa0] sm:$0xff]
      %v626 = vld [vmem:[%s2 + $0xa8] sm:$0xff]
      %v627 = vld [vmem:[%s2 + $0xb0] sm:$0xff]
      %v628 = vld [vmem:[%s2 + $0xb8] sm:$0xff]
      %v629 = vld [vmem:[%s2 + $0xc0] sm:$0xff]
      %v630 = vld [vmem:[%s2 + $0xc8] sm:$0xff]
      %v631 = vld [vmem:[%s2 + $0xd0] sm:$0xff]
      %v632 = vld [vmem:[%s2 + $0xd8] sm:$0xff]
      %v633 = vld [vmem:[%s2 + $0xe0] sm:$0xff]
      %v634 = vld [vmem:[%s2 + $0xe8] sm:$0xff]
      %v635 = vld [vmem:[%s2 + $0xf0] sm:$0xff]
      %v636 = vld [vmem:[%s2 + $0xf8] sm:$0xff]
      %v637 = vld [vmem:[%s2 + $0x100] sm:$0xff]
      %v638 = vld [vmem:[%s2 + $0x108] sm:$0xff]
      %v639 = vld [vmem:[%s2 + $0x110] sm:$0xff]
      %v640 = vld [vmem:[%s2 + $0x118] sm:$0xff]
      %v641 = vld [vmem:[%s2 + $0x120] sm:$0xff]
      %v642 = vld [vmem:[%s2 + $0x128] sm:$0xff]
      %v643 = vld [vmem:[%s2 + $0x130] sm:$0xff]
      %v644 = vld [vmem:[%s2 + $0x138] sm:$0xff]
      %v645 = vld [vmem:[%s2 + $0x140] sm:$0xff]
      %v646 = vld [vmem:[%s2 + $0x148] sm:$0xff]
      %v647 = vld [vmem:[%s2 + $0x150] sm:$0xff]
      %v648 = vld [vmem:[%s2 + $0x158] sm:$0xff]
      %v649 = vld [vmem:[%s2 + $0x160] sm:$0xff]
      %v650 = vld [vmem:[%s2 + $0x168] sm:$0xff]
      %v651 = vld [vmem:[%s2 + $0x170] sm:$0xff]
      %v652 = vld [vmem:[%s2 + $0x178] sm:$0xff]
      %v653 = vld [vmem:[%s2 + $0x180] sm:$0xff]
      %v654 = vld [vmem:[%s2 + $0x188] sm:$0xff]
      %v655 = vld [vmem:[%s2 + $0x190] sm:$0xff]
      %v656 = vld [vmem:[%s2 + $0x198] sm:$0xff]
      %v657 = vld [vmem:[%s2 + $0x1a0] sm:$0xff]
      %v658 = vld [vmem:[%s2 + $0x1a8] sm:$0xff]
      %v659 = vld [vmem:[%s2 + $0x1b0] sm:$0xff]
      %v660 = vld [vmem:[%s2 + $0x1b8] sm:$0xff]
      %v661 = vld [vmem:[%s2 + $0x1c0] sm:$0xff]
      %v662 = vld [vmem:[%s2 + $0x1c8] sm:$0xff]
      %v663 = vld [vmem:[%s2 + $0x1d0] sm:$0xff]
      %v664 = vld [vmem:[%s2 + $0x1d8] sm:$0xff]
      %v665 = vld [vmem:[%s2 + $0x1e0] sm:$0xff]
      %v666 = vld [vmem:[%s2 + $0x1e8] sm:$0xff]
      %v667 = vld [vmem:[%s2 + $0x1f0] sm:$0xff]
      %v668 = vld [vmem:[%s2 + $0x1f8] sm:$0xff]
      %669 = vmatprep.subr.mxu0 %v606
      %670 = vmatpush1.msra.mxu0 %v605
      %671 = vmatprep.subr.mxu0 %v610
      %672 = vmatpush1.msra.mxu0 %v609
      %673 = vmatprep.subr.mxu0 %v614
      %674 = vmatpush1.msra.mxu0 %v613
      %675 = vmatprep.subr.mxu0 %v618
      %676 = vmatpush1.msra.mxu0 %v617
      %677 = vmatprep.subr.mxu0 %v622
      %678 = vmatpush1.msra.mxu0 %v621
      %679 = vmatprep.subr.mxu0 %v626
      %680 = vmatpush1.msra.mxu0 %v625
      %681 = vmatprep.subr.mxu0 %v630
      %682 = vmatpush1.msra.mxu0 %v629
      %683 = vmatprep.subr.mxu0 %v634
      %684 = vmatpush1.msra.mxu0 %v633
      %685 = vmatprep.subr.mxu0 %v638
      %686 = vmatpush1.msra.mxu0 %v637
      %687 = vmatprep.subr.mxu0 %v642
      %688 = vmatpush1.msra.mxu0 %v641
      %689 = vmatprep.subr.mxu0 %v646
      %690 = vmatpush1.msra.mxu0 %v645
      %691 = vmatprep.subr.mxu0 %v650
      %692 = vmatpush1.msra.mxu0 %v649
      %693 = vmatprep.subr.mxu0 %v654
      %694 = vmatpush1.msra.mxu0 %v653
      %695 = vmatprep.subr.mxu0 %v658
      %696 = vmatpush1.msra.mxu0 %v657
      %697 = vmatprep.subr.mxu0 %v662
      %698 = vmatpush1.msra.mxu0 %v661
      %699 = vmatprep.subr.mxu0 %v666
      %700 = vmatpush1.msra.mxu0 %v665
      %701 = vmatprep.subr.mxu0 0.0
      %702 = vmatpush1.msra.mxu0 0.0
      %703 = vmatprep.subr.mxu0 0.0
      %704 = vmatpush1.msra.mxu0 0.0
      %705 = vmatprep.subr.mxu0 0.0
      %706 = vmatpush1.msra.mxu0 0.0
      %707 = vmatprep.subr.mxu0 0.0
      %708 = vmatpush1.msra.mxu0 0.0
      %709 = vmatprep.subr.mxu0 0.0
      %710 = vmatpush1.msra.mxu0 0.0
      %711 = vmatprep.subr.mxu0 0.0
      %712 = vmatpush1.msra.mxu0 0.0
      %713 = vmatprep.subr.mxu0 0.0
      %714 = vmatpush1.msra.mxu0 0.0
      %715 = vmatprep.subr.mxu0 0.0
      %716 = vmatpush1.msra.mxu0 0.0
      %717 = vmatprep.subr.mxu0 0.0
      %718 = vmatpush1.msra.mxu0 0.0
      %719 = vmatprep.subr.mxu0 0.0
      %720 = vmatpush1.msra.mxu0 0.0
      %721 = vmatprep.subr.mxu0 0.0
      %722 = vmatpush1.msra.mxu0 0.0
      %723 = vmatprep.subr.mxu0 0.0
      %724 = vmatpush1.msra.mxu0 0.0
      %725 = vmatprep.subr.mxu0 0.0
      %726 = vmatpush1.msra.mxu0 0.0
      %727 = vmatprep.subr.mxu0 0.0
      %728 = vmatpush1.msra.mxu0 0.0
      %729 = vmatprep.subr.mxu0 0.0
      %730 = vmatpush1.msra.mxu0 0.0
      %731 = vmatprep.subr.mxu0 0.0
      %732 = vmatpush1.msra.mxu0 0.0
      %733 = vmatprep.mubr.f32.mxu0 0.0
      %734 = vmatmul.mubr.f32.gmra.mrb[0].mxu0 %v602
      %v735 = vpop.f32.mrb[0].mxu0
      %v736 = vadd.f32 0.0, %v735
      %v737 = vpop.f32.mrb[0].mxu0
      %v738 = vadd.f32 0.0, %v737
      %739 = vdwg.mxu0
      %740 = vmatprep.subr.mxu0 %v608
      %741 = vmatpush1.msra.mxu0 %v607
      %742 = vmatprep.subr.mxu0 %v612
      %743 = vmatpush1.msra.mxu0 %v611
      %744 = vmatprep.subr.mxu0 %v616
      %745 = vmatpush1.msra.mxu0 %v615
      %746 = vmatprep.subr.mxu0 %v620
      %747 = vmatpush1.msra.mxu0 %v619
      %748 = vmatprep.subr.mxu0 %v624
      %749 = vmatpush1.msra.mxu0 %v623
      %750 = vmatprep.subr.mxu0 %v628
      %751 = vmatpush1.msra.mxu0 %v627
      %752 = vmatprep.subr.mxu0 %v632
      %753 = vmatpush1.msra.mxu0 %v631
      %754 = vmatprep.subr.mxu0 %v636
      %755 = vmatpush1.msra.mxu0 %v635
      %756 = vmatprep.subr.mxu0 %v640
      %757 = vmatpush1.msra.mxu0 %v639
      %758 = vmatprep.subr.mxu0 %v644
      %759 = vmatpush1.msra.mxu0 %v643
      %760 = vmatprep.subr.mxu0 %v648
      %761 = vmatpush1.msra.mxu0 %v647
      %762 = vmatprep.subr.mxu0 %v652
      %763 = vmatpush1.msra.mxu0 %v651
      %764 = vmatprep.subr.mxu0 %v656
      %765 = vmatpush1.msra.mxu0 %v655
      %766 = vmatprep.subr.mxu0 %v660
      %767 = vmatpush1.msra.mxu0 %v659
      %768 = vmatprep.subr.mxu0 %v664
      %769 = vmatpush1.msra.mxu0 %v663
      %770 = vmatprep.subr.mxu0 %v668
      %771 = vmatpush1.msra.mxu0 %v667
      %772 = vmatprep.subr.mxu0 0.0
      %773 = vmatpush1.msra.mxu0 0.0
      %774 = vmatprep.subr.mxu0 0.0
      %775 = vmatpush1.msra.mxu0 0.0
      %776 = vmatprep.subr.mxu0 0.0
      %777 = vmatpush1.msra.mxu0 0.0
      %778 = vmatprep.subr.mxu0 0.0
      %779 = vmatpush1.msra.mxu0 0.0
      %780 = vmatprep.subr.mxu0 0.0
      %781 = vmatpush1.msra.mxu0 0.0
      %782 = vmatprep.subr.mxu0 0.0
      %783 = vmatpush1.msra.mxu0 0.0
      %784 = vmatprep.subr.mxu0 0.0
      %785 = vmatpush1.msra.mxu0 0.0
      %786 = vmatprep.subr.mxu0 0.0
      %787 = vmatpush1.msra.mxu0 0.0
      %788 = vmatprep.subr.mxu0 0.0
      %789 = vmatpush1.msra.mxu0 0.0
      %790 = vmatprep.subr.mxu0 0.0
      %791 = vmatpush1.msra.mxu0 0.0
      %792 = vmatprep.subr.mxu0 0.0
      %793 = vmatpush1.msra.mxu0 0.0
      %794 = vmatprep.subr.mxu0 0.0
      %795 = vmatpush1.msra.mxu0 0.0
      %796 = vmatprep.subr.mxu0 0.0
      %797 = vmatpush1.msra.mxu0 0.0
      %798 = vmatprep.subr.mxu0 0.0
      %799 = vmatpush1.msra.mxu0 0.0
      %800 = vmatprep.subr.mxu0 0.0
      %801 = vmatpush1.msra.mxu0 0.0
      %802 = vmatprep.subr.mxu0 0.0
      %803 = vmatpush1.msra.mxu0 0.0
      %804 = vmatprep.mubr.f32.mxu0 0.0
      %805 = vmatmul.mubr.f32.gmra.mrb[0].mxu0 %v602
      %v806 = vpop.f32.mrb[0].mxu0
      %v807 = vadd.f32 0.0, %v806
      %v808 = vpop.f32.mrb[0].mxu0
      %v809 = vadd.f32 0.0, %v808
      %810 = vdwg.mxu0
      %v811 = vadd.f32 %v443, %v736
      %v812 = vadd.f32 %v445, %v738
      %v813 = vadd.f32 %v556, %v807
      %v814 = vadd.f32 %v558, %v809
      %v815 = vxor.u32 %v811, 2147483648
      %v816 = vmul.f32 %v815, 1.442695
      %v817 = vpow.pop %v816
      %v818 = vadd.f32 %v817, 1.0
      %v819 = vrcp.pop %v818
      %v820 = vmul.f32 1.0, %v819
      %v821 = vxor.u32 %v812, 2147483648
      %v822 = vmul.f32 %v821, 1.442695
      %v823 = vpow.pop %v822
      %v824 = vadd.f32 %v823, 1.0
      %v825 = vrcp.pop %v824
      %v826 = vmul.f32 1.0, %v825
      %v827 = vtanh.pop %v813
      %v828 = vxor.u32 %v814, 2147483648
      %v829 = vmul.f32 %v828, 1.442695
      %v830 = vpow.pop %v829
      %v831 = vadd.f32 %v830, 1.0
      %v832 = vrcp.pop %v831
      %v833 = vmul.f32 1.0, %v832
      %v834 = vmul.f32 %v826, %v603
      %v835 = vmul.f32 %v820, %v827
      %v836 = vadd.f32 %v834, %v835
      %v837 = vtanh.pop %v836
      %v838 = vmul.f32 %v833, %v837
      %v839 = vadd.f32 %v604, %v838
      %840 = vmatprep.subr.mxu0 %v606
      %841 = vmatpush1.msra.mxu0 %v605
      %842 = vmatprep.subr.mxu0 %v610
      %843 = vmatpush1.msra.mxu0 %v609
      %844 = vmatprep.subr.mxu0 %v614
      %845 = vmatpush1.msra.mxu0 %v613
      %846 = vmatprep.subr.mxu0 %v618
      %847 = vmatpush1.msra.mxu0 %v617
      %848 = vmatprep.subr.mxu0 %v622
      %849 = vmatpush1.msra.mxu0 %v621
      %850 = vmatprep.subr.mxu0 %v626
      %851 = vmatpush1.msra.mxu0 %v625
      %852 = vmatprep.subr.mxu0 %v630
      %853 = vmatpush1.msra.mxu0 %v629
      %854 = vmatprep.subr.mxu0 %v634
      %855 = vmatpush1.msra.mxu0 %v633
      %856 = vmatprep.subr.mxu0 %v638
      %857 = vmatpush1.msra.mxu0 %v637
      %858 = vmatprep.subr.mxu0 %v642
      %859 = vmatpush1.msra.mxu0 %v641
      %860 = vmatprep.subr.mxu0 %v646
      %861 = vmatpush1.msra.mxu0 %v645
      %862 = vmatprep.subr.mxu0 %v650
      %863 = vmatpush1.msra.mxu0 %v649
      %864 = vmatprep.subr.mxu0 %v654
      %865 = vmatpush1.msra.mxu0 %v653
      %866 = vmatprep.subr.mxu0 %v658
      %867 = vmatpush1.msra.mxu0 %v657
      %868 = vmatprep.subr.mxu0 %v662
      %869 = vmatpush1.msra.mxu0 %v661
      %870 = vmatprep.subr.mxu0 %v666
      %871 = vmatpush1.msra.mxu0 %v665
      %872 = vmatprep.subr.mxu0 0.0
      %873 = vmatpush1.msra.mxu0 0.0
      %874 = vmatprep.subr.mxu0 0.0
      %875 = vmatpush1.msra.mxu0 0.0
      %876 = vmatprep.subr.mxu0 0.0
      %877 = vmatpush1.msra.mxu0 0.0
      %878 = vmatprep.subr.mxu0 0.0
      %879 = vmatpush1.msra.mxu0 0.0
      %880 = vmatprep.subr.mxu0 0.0
      %881 = vmatpush1.msra.mxu0 0.0
      %882 = vmatprep.subr.mxu0 0.0
      %883 = vmatpush1.msra.mxu0 0.0
      %884 = vmatprep.subr.mxu0 0.0
      %885 = vmatpush1.msra.mxu0 0.0
      %886 = vmatprep.subr.mxu0 0.0
      %887 = vmatpush1.msra.mxu0 0.0
      %888 = vmatprep.subr.mxu0 0.0
      %889 = vmatpush1.msra.mxu0 0.0
      %890 = vmatprep.subr.mxu0 0.0
      %891 = vmatpush1.msra.mxu0 0.0
      %892 = vmatprep.subr.mxu0 0.0
      %893 = vmatpush1.msra.mxu0 0.0
      %894 = vmatprep.subr.mxu0 0.0
      %895 = vmatpush1.msra.mxu0 0.0
      %896 = vmatprep.subr.mxu0 0.0
      %897 = vmatpush1.msra.mxu0 0.0
      %898 = vmatprep.subr.mxu0 0.0
      %899 = vmatpush1.msra.mxu0 0.0
      %900 = vmatprep.subr.mxu0 0.0
      %901 = vmatpush1.msra.mxu0 0.0
      %902 = vmatprep.subr.mxu0 0.0
      %903 = vmatpush1.msra.mxu0 0.0
      %904 = vmatprep.mubr.f32.mxu0 0.0
      %905 = vmatmul.mubr.f32.gmra.mrb[0].mxu0 %v838
      %v906 = vpop.f32.mrb[0].mxu0
      %v907 = vadd.f32 0.0, %v906
      %v908 = vpop.f32.mrb[0].mxu0
      %v909 = vadd.f32 0.0, %v908
      %910 = vdwg.mxu0
      %911 = vmatprep.subr.mxu0 %v608
      %912 = vmatpush1.msra.mxu0 %v607
      %913 = vmatprep.subr.mxu0 %v612
      %914 = vmatpush1.msra.mxu0 %v611
      %915 = vmatprep.subr.mxu0 %v616
      %916 = vmatpush1.msra.mxu0 %v615
      %917 = vmatprep.subr.mxu0 %v620
      %918 = vmatpush1.msra.mxu0 %v619
      %919 = vmatprep.subr.mxu0 %v624
      %920 = vmatpush1.msra.mxu0 %v623
      %921 = vmatprep.subr.mxu0 %v628
      %922 = vmatpush1.msra.mxu0 %v627
      %923 = vmatprep.subr.mxu0 %v632
      %924 = vmatpush1.msra.mxu0 %v631
      %925 = vmatprep.subr.mxu0 %v636
      %926 = vmatpush1.msra.mxu0 %v635
      %927 = vmatprep.subr.mxu0 %v640
      %928 = vmatpush1.msra.mxu0 %v639
      %929 = vmatprep.subr.mxu0 %v644
      %930 = vmatpush1.msra.mxu0 %v643
      %931 = vmatprep.subr.mxu0 %v648
      %932 = vmatpush1.msra.mxu0 %v647
      %933 = vmatprep.subr.mxu0 %v652
      %934 = vmatpush1.msra.mxu0 %v651
      %935 = vmatprep.subr.mxu0 %v656
      %936 = vmatpush1.msra.mxu0 %v655
      %937 = vmatprep.subr.mxu0 %v660
      %938 = vmatpush1.msra.mxu0 %v659
      %939 = vmatprep.subr.mxu0 %v664
      %940 = vmatpush1.msra.mxu0 %v663
      %941 = vmatprep.subr.mxu0 %v668
      %942 = vmatpush1.msra.mxu0 %v667
      %943 = vmatprep.subr.mxu0 0.0
      %944 = vmatpush1.msra.mxu0 0.0
      %945 = vmatprep.subr.mxu0 0.0
      %946 = vmatpush1.msra.mxu0 0.0
      %947 = vmatprep.subr.mxu0 0.0
      %948 = vmatpush1.msra.mxu0 0.0
      %949 = vmatprep.subr.mxu0 0.0
      %950 = vmatpush1.msra.mxu0 0.0
      %951 = vmatprep.subr.mxu0 0.0
      %952 = vmatpush1.msra.mxu0 0.0
      %953 = vmatprep.subr.mxu0 0.0
      %954 = vmatpush1.msra.mxu0 0.0
      %955 = vmatprep.subr.mxu0 0.0
      %956 = vmatpush1.msra.mxu0 0.0
      %957 = vmatprep.subr.mxu0 0.0
      %958 = vmatpush1.msra.mxu0 0.0
      %959 = vmatprep.subr.mxu0 0.0
      %960 = vmatpush1.msra.mxu0 0.0
      %961 = vmatprep.subr.mxu0 0.0
      %962 = vmatpush1.msra.mxu0 0.0
      %963 = vmatprep.subr.mxu0 0.0
      %964 = vmatpush1.msra.mxu0 0.0
      %965 = vmatprep.subr.mxu0 0.0
      %966 = vmatpush1.msra.mxu0 0.0
      %967 = vmatprep.subr.mxu0 0.0
      %968 = vmatpush1.msra.mxu0 0.0
      %969 = vmatprep.subr.mxu0 0.0
      %970 = vmatpush1.msra.mxu0 0.0
      %971 = vmatprep.subr.mxu0 0.0
      %972 = vmatpush1.msra.mxu0 0.0
      %973 = vmatprep.subr.mxu0 0.0
      %974 = vmatpush1.msra.mxu0 0.0
      %975 = vmatprep.mubr.f32.mxu0 0.0
      %976 = vmatmul.mubr.f32.gmra.mrb[0].mxu0 %v838
      %v977 = vpop.f32.mrb[0].mxu0
      %v978 = vadd.f32 0.0, %v977
      %v979 = vpop.f32.mrb[0].mxu0
      %v980 = vadd.f32 0.0, %v979
      %981 = vdwg.mxu0
      %v982 = vadd.f32 %v449, %v907
      %v983 = vadd.f32 %v451, %v909
      %v984 = vadd.f32 %v562, %v978
      %v985 = vadd.f32 %v564, %v980
      %v986 = vxor.u32 %v982, 2147483648
      %v987 = vmul.f32 %v986, 1.442695
      %v988 = vpow.pop %v987
      %v989 = vadd.f32 %v988, 1.0
      %v990 = vrcp.pop %v989
      %v991 = vmul.f32 1.0, %v990
      %v992 = vxor.u32 %v983, 2147483648
      %v993 = vmul.f32 %v992, 1.442695
      %v994 = vpow.pop %v993
      %v995 = vadd.f32 %v994, 1.0
      %v996 = vrcp.pop %v995
      %v997 = vmul.f32 1.0, %v996
      %v998 = vtanh.pop %v984
      %v999 = vxor.u32 %v985, 2147483648
      %v1000 = vmul.f32 %v999, 1.442695
      %v1001 = vpow.pop %v1000
      %v1002 = vadd.f32 %v1001, 1.0
      %v1003 = vrcp.pop %v1002
      %v1004 = vmul.f32 1.0, %v1003
      %v1005 = vmul.f32 %v997, %v836
      %v1006 = vmul.f32 %v991, %v998
      %v1007 = vadd.f32 %v1005, %v1006
      %v1008 = vtanh.pop %v1007
      %v1009 = vmul.f32 %v1004, %v1008
      %v1010 = vadd.f32 %v839, %v1009
      %1011 = vmatprep.subr.mxu0 %v606
      %1012 = vmatpush1.msra.mxu0 %v605
      %1013 = vmatprep.subr.mxu0 %v610
      %1014 = vmatpush1.msra.mxu0 %v609
      %1015 = vmatprep.subr.mxu0 %v614
      %1016 = vmatpush1.msra.mxu0 %v613
      %1017 = vmatprep.subr.mxu0 %v618
      %1018 = vmatpush1.msra.mxu0 %v617
      %1019 = vmatprep.subr.mxu0 %v622
      %1020 = vmatpush1.msra.mxu0 %v621
      %1021 = vmatprep.subr.mxu0 %v626
      %1022 = vmatpush1.msra.mxu0 %v625
      %1023 = vmatprep.subr.mxu0 %v630
      %1024 = vmatpush1.msra.mxu0 %v629
      %1025 = vmatprep.subr.mxu0 %v634
      %1026 = vmatpush1.msra.mxu0 %v633
      %1027 = vmatprep.subr.mxu0 %v638
      %1028 = vmatpush1.msra.mxu0 %v637
      %1029 = vmatprep.subr.mxu0 %v642
      %1030 = vmatpush1.msra.mxu0 %v641
      %1031 = vmatprep.subr.mxu0 %v646
      %1032 = vmatpush1.msra.mxu0 %v645
      %1033 = vmatprep.subr.mxu0 %v650
      %1034 = vmatpush1.msra.mxu0 %v649
      %1035 = vmatprep.subr.mxu0 %v654
      %1036 = vmatpush1.msra.mxu0 %v653
      %1037 = vmatprep.subr.mxu0 %v658
      %1038 = vmatpush1.msra.mxu0 %v657
      %1039 = vmatprep.subr.mxu0 %v662
      %1040 = vmatpush1.msra.mxu0 %v661
      %1041 = vmatprep.subr.mxu0 %v666
      %1042 = vmatpush1.msra.mxu0 %v665
      %1043 = vmatprep.subr.mxu0 0.0
      %1044 = vmatpush1.msra.mxu0 0.0
      %1045 = vmatprep.subr.mxu0 0.0
      %1046 = vmatpush1.msra.mxu0 0.0
      %1047 = vmatprep.subr.mxu0 0.0
      %1048 = vmatpush1.msra.mxu0 0.0
      %1049 = vmatprep.subr.mxu0 0.0
      %1050 = vmatpush1.msra.mxu0 0.0
      %1051 = vmatprep.subr.mxu0 0.0
      %1052 = vmatpush1.msra.mxu0 0.0
      %1053 = vmatprep.subr.mxu0 0.0
      %1054 = vmatpush1.msra.mxu0 0.0
      %1055 = vmatprep.subr.mxu0 0.0
      %1056 = vmatpush1.msra.mxu0 0.0
      %1057 = vmatprep.subr.mxu0 0.0
      %1058 = vmatpush1.msra.mxu0 0.0
      %1059 = vmatprep.subr.mxu0 0.0
      %1060 = vmatpush1.msra.mxu0 0.0
      %1061 = vmatprep.subr.mxu0 0.0
      %1062 = vmatpush1.msra.mxu0 0.0
      %1063 = vmatprep.subr.mxu0 0.0
      %1064 = vmatpush1.msra.mxu0 0.0
      %1065 = vmatprep.subr.mxu0 0.0
      %1066 = vmatpush1.msra.mxu0 0.0
      %1067 = vmatprep.subr.mxu0 0.0
      %1068 = vmatpush1.msra.mxu0 0.0
      %1069 = vmatprep.subr.mxu0 0.0
      %1070 = vmatpush1.msra.mxu0 0.0
      %1071 = vmatprep.subr.mxu0 0.0
      %1072 = vmatpush1.msra.mxu0 0.0
      %1073 = vmatprep.subr.mxu0 0.0
      %1074 = vmatpush1.msra.mxu0 0.0
      %1075 = vmatprep.mubr.f32.mxu0 0.0
      %1076 = vmatmul.mubr.f32.gmra.mrb[0].mxu0 %v1009
      %v1077 = vpop.f32.mrb[0].mxu0
      %v1078 = vadd.f32 0.0, %v1077
      %v1079 = vpop.f32.mrb[0].mxu0
      %v1080 = vadd.f32 0.0, %v1079
      %1081 = vdwg.mxu0
      %1082 = vmatprep.subr.mxu0 %v608
      %1083 = vmatpush1.msra.mxu0 %v607
      %1084 = vmatprep.subr.mxu0 %v612
      %1085 = vmatpush1.msra.mxu0 %v611
      %1086 = vmatprep.subr.mxu0 %v616
      %1087 = vmatpush1.msra.mxu0 %v615
      %1088 = vmatprep.subr.mxu0 %v620
      %1089 = vmatpush1.msra.mxu0 %v619
      %1090 = vmatprep.subr.mxu0 %v624
      %1091 = vmatpush1.msra.mxu0 %v623
      %1092 = vmatprep.subr.mxu0 %v628
      %1093 = vmatpush1.msra.mxu0 %v627
      %1094 = vmatprep.subr.mxu0 %v632
      %1095 = vmatpush1.msra.mxu0 %v631
      %1096 = vmatprep.subr.mxu0 %v636
      %1097 = vmatpush1.msra.mxu0 %v635
      %1098 = vmatprep.subr.mxu0 %v640
      %1099 = vmatpush1.msra.mxu0 %v639
      %1100 = vmatprep.subr.mxu0 %v644
      %1101 = vmatpush1.msra.mxu0 %v643
      %1102 = vmatprep.subr.mxu0 %v648
      %1103 = vmatpush1.msra.mxu0 %v647
      %1104 = vmatprep.subr.mxu0 %v652
      %1105 = vmatpush1.msra.mxu0 %v651
      %1106 = vmatprep.subr.mxu0 %v656
      %1107 = vmatpush1.msra.mxu0 %v655
      %1108 = vmatprep.subr.mxu0 %v660
      %1109 = vmatpush1.msra.mxu0 %v659
      %1110 = vmatprep.subr.mxu0 %v664
      %1111 = vmatpush1.msra.mxu0 %v663
      %1112 = vmatprep.subr.mxu0 %v668
      %1113 = vmatpush1.msra.mxu0 %v667
      %1114 = vmatprep.subr.mxu0 0.0
      %1115 = vmatpush1.msra.mxu0 0.0
      %1116 = vmatprep.subr.mxu0 0.0
      %1117 = vmatpush1.msra.mxu0 0.0
      %1118 = vmatprep.subr.mxu0 0.0
      %1119 = vmatpush1.msra.mxu0 0.0
      %1120 = vmatprep.subr.mxu0 0.0
      %1121 = vmatpush1.msra.mxu0 0.0
      %1122 = vmatprep.subr.mxu0 0.0
      %1123 = vmatpush1.msra.mxu0 0.0
      %1124 = vmatprep.subr.mxu0 0.0
      %1125 = vmatpush1.msra.mxu0 0.0
      %1126 = vmatprep.subr.mxu0 0.0
      %1127 = vmatpush1.msra.mxu0 0.0
      %1128 = vmatprep.subr.mxu0 0.0
      %1129 = vmatpush1.msra.mxu0 0.0
      %1130 = vmatprep.subr.mxu0 0.0
      %1131 = vmatpush1.msra.mxu0 0.0
      %1132 = vmatprep.subr.mxu0 0.0
      %1133 = vmatpush1.msra.mxu0 0.0
      %1134 = vmatprep.subr.mxu0 0.0
      %1135 = vmatpush1.msra.mxu0 0.0
      %1136 = vmatprep.subr.mxu0 0.0
      %1137 = vmatpush1.msra.mxu0 0.0
      %1138 = vmatprep.subr.mxu0 0.0
      %1139 = vmatpush1.msra.mxu0 0.0
      %1140 = vmatprep.subr.mxu0 0.0
      %1141 = vmatpush1.msra.mxu0 0.0
      %1142 = vmatprep.subr.mxu0 0.0
      %1143 = vmatpush1.msra.mxu0 0.0
      %1144 = vmatprep.subr.mxu0 0.0
      %1145 = vmatpush1.msra.mxu0 0.0
      %1146 = vmatprep.mubr.f32.mxu0 0.0
      %1147 = vmatmul.mubr.f32.gmra.mrb[0].mxu0 %v1009
      %v1148 = vpop.f32.mrb[0].mxu0
      %v1149 = vadd.f32 0.0, %v1148
      %v1150 = vpop.f32.mrb[0].mxu0
      %v1151 = vadd.f32 0.0, %v1150
      %1152 = vdwg.mxu0
      %v1153 = vadd.f32 %v455, %v1078
      %v1154 = vadd.f32 %v457, %v1080
      %v1155 = vadd.f32 %v568, %v1149
      %v1156 = vadd.f32 %v570, %v1151
      %v1157 = vxor.u32 %v1153, 2147483648
      %v1158 = vmul.f32 %v1157, 1.442695
      %v1159 = vpow.pop %v1158
      %v1160 = vadd.f32 %v1159, 1.0
      %v1161 = vrcp.pop %v1160
      %v1162 = vmul.f32 1.0, %v1161
      %v1163 = vxor.u32 %v1154, 2147483648
      %v1164 = vmul.f32 %v1163, 1.442695
      %v1165 = vpow.pop %v1164
      %v1166 = vadd.f32 %v1165, 1.0
      %v1167 = vrcp.pop %v1166
      %v1168 = vmul.f32 1.0, %v1167
      %v1169 = vtanh.pop %v1155
      %v1170 = vxor.u32 %v1156, 2147483648
      %v1171 = vmul.f32 %v1170, 1.442695
      %v1172 = vpow.pop %v1171
      %v1173 = vadd.f32 %v1172, 1.0
      %v1174 = vrcp.pop %v1173
      %v1175 = vmul.f32 1.0, %v1174
      %v1176 = vmul.f32 %v1168, %v1007
      %v1177 = vmul.f32 %v1162, %v1169
      %v1178 = vadd.f32 %v1176, %v1177
      %v1179 = vtanh.pop %v1178
      %v1180 = vmul.f32 %v1175, %v1179
      %v1181 = vadd.f32 %v1010, %v1180
      %1182 = vmatprep.subr.mxu0 %v606
      %1183 = vmatpush1.msra.mxu0 %v605
      %1184 = vmatprep.subr.mxu0 %v610
      %1185 = vmatpush1.msra.mxu0 %v609
      %1186 = vmatprep.subr.mxu0 %v614
      %1187 = vmatpush1.msra.mxu0 %v613
      %1188 = vmatprep.subr.mxu0 %v618
      %1189 = vmatpush1.msra.mxu0 %v617
      %1190 = vmatprep.subr.mxu0 %v622
      %1191 = vmatpush1.msra.mxu0 %v621
      %1192 = vmatprep.subr.mxu0 %v626
      %1193 = vmatpush1.msra.mxu0 %v625
      %1194 = vmatprep.subr.mxu0 %v630
      %1195 = vmatpush1.msra.mxu0 %v629
      %1196 = vmatprep.subr.mxu0 %v634
      %1197 = vmatpush1.msra.mxu0 %v633
      %1198 = vmatprep.subr.mxu0 %v638
      %1199 = vmatpush1.msra.mxu0 %v637
      %1200 = vmatprep.subr.mxu0 %v642
      %1201 = vmatpush1.msra.mxu0 %v641
      %1202 = vmatprep.subr.mxu0 %v646
      %1203 = vmatpush1.msra.mxu0 %v645
      %1204 = vmatprep.subr.mxu0 %v650
      %1205 = vmatpush1.msra.mxu0 %v649
      %1206 = vmatprep.subr.mxu0 %v654
      %1207 = vmatpush1.msra.mxu0 %v653
      %1208 = vmatprep.subr.mxu0 %v658
      %1209 = vmatpush1.msra.mxu0 %v657
      %1210 = vmatprep.subr.mxu0 %v662
      %1211 = vmatpush1.msra.mxu0 %v661
      %1212 = vmatprep.subr.mxu0 %v666
      %1213 = vmatpush1.msra.mxu0 %v665
      %1214 = vmatprep.subr.mxu0 0.0
      %1215 = vmatpush1.msra.mxu0 0.0
      %1216 = vmatprep.subr.mxu0 0.0
      %1217 = vmatpush1.msra.mxu0 0.0
      %1218 = vmatprep.subr.mxu0 0.0
      %1219 = vmatpush1.msra.mxu0 0.0
      %1220 = vmatprep.subr.mxu0 0.0
      %1221 = vmatpush1.msra.mxu0 0.0
      %1222 = vmatprep.subr.mxu0 0.0
      %1223 = vmatpush1.msra.mxu0 0.0
      %1224 = vmatprep.subr.mxu0 0.0
      %1225 = vmatpush1.msra.mxu0 0.0
      %1226 = vmatprep.subr.mxu0 0.0
      %1227 = vmatpush1.msra.mxu0 0.0
      %1228 = vmatprep.subr.mxu0 0.0
      %1229 = vmatpush1.msra.mxu0 0.0
      %1230 = vmatprep.subr.mxu0 0.0
      %1231 = vmatpush1.msra.mxu0 0.0
      %1232 = vmatprep.subr.mxu0 0.0
      %1233 = vmatpush1.msra.mxu0 0.0
      %1234 = vmatprep.subr.mxu0 0.0
      %1235 = vmatpush1.msra.mxu0 0.0
      %1236 = vmatprep.subr.mxu0 0.0
      %1237 = vmatpush1.msra.mxu0 0.0
      %1238 = vmatprep.subr.mxu0 0.0
      %1239 = vmatpush1.msra.mxu0 0.0
      %1240 = vmatprep.subr.mxu0 0.0
      %1241 = vmatpush1.msra.mxu0 0.0
      %1242 = vmatprep.subr.mxu0 0.0
      %1243 = vmatpush1.msra.mxu0 0.0
      %1244 = vmatprep.subr.mxu0 0.0
      %1245 = vmatpush1.msra.mxu0 0.0
      %1246 = vmatprep.mubr.f32.mxu0 0.0
      %1247 = vmatmul.mubr.f32.gmra.mrb[0].mxu0 %v1180
      %v1248 = vpop.f32.mrb[0].mxu0
      %v1249 = vadd.f32 0.0, %v1248
      %v1250 = vpop.f32.mrb[0].mxu0
      %v1251 = vadd.f32 0.0, %v1250
      %1252 = vdwg.mxu0
      %1253 = vmatprep.subr.mxu0 %v608
      %1254 = vmatpush1.msra.mxu0 %v607
      %1255 = vmatprep.subr.mxu0 %v612
      %1256 = vmatpush1.msra.mxu0 %v611
      %1257 = vmatprep.subr.mxu0 %v616
      %1258 = vmatpush1.msra.mxu0 %v615
      %1259 = vmatprep.subr.mxu0 %v620
      %1260 = vmatpush1.msra.mxu0 %v619
      %1261 = vmatprep.subr.mxu0 %v624
      %1262 = vmatpush1.msra.mxu0 %v623
      %1263 = vmatprep.subr.mxu0 %v628
      %1264 = vmatpush1.msra.mxu0 %v627
      %1265 = vmatprep.subr.mxu0 %v632
      %1266 = vmatpush1.msra.mxu0 %v631
      %1267 = vmatprep.subr.mxu0 %v636
      %1268 = vmatpush1.msra.mxu0 %v635
      %1269 = vmatprep.subr.mxu0 %v640
      %1270 = vmatpush1.msra.mxu0 %v639
      %1271 = vmatprep.subr.mxu0 %v644
      %1272 = vmatpush1.msra.mxu0 %v643
      %1273 = vmatprep.subr.mxu0 %v648
      %1274 = vmatpush1.msra.mxu0 %v647
      %1275 = vmatprep.subr.mxu0 %v652
      %1276 = vmatpush1.msra.mxu0 %v651
      %1277 = vmatprep.subr.mxu0 %v656
      %1278 = vmatpush1.msra.mxu0 %v655
      %1279 = vmatprep.subr.mxu0 %v660
      %1280 = vmatpush1.msra.mxu0 %v659
      %1281 = vmatprep.subr.mxu0 %v664
      %1282 = vmatpush1.msra.mxu0 %v663
      %1283 = vmatprep.subr.mxu0 %v668
      %1284 = vmatpush1.msra.mxu0 %v667
      %1285 = vmatprep.subr.mxu0 0.0
      %1286 = vmatpush1.msra.mxu0 0.0
      %1287 = vmatprep.subr.mxu0 0.0
      %1288 = vmatpush1.msra.mxu0 0.0
      %1289 = vmatprep.subr.mxu0 0.0
      %1290 = vmatpush1.msra.mxu0 0.0
      %1291 = vmatprep.subr.mxu0 0.0
      %1292 = vmatpush1.msra.mxu0 0.0
      %1293 = vmatprep.subr.mxu0 0.0
      %1294 = vmatpush1.msra.mxu0 0.0
      %1295 = vmatprep.subr.mxu0 0.0
      %1296 = vmatpush1.msra.mxu0 0.0
      %1297 = vmatprep.subr.mxu0 0.0
      %1298 = vmatpush1.msra.mxu0 0.0
      %1299 = vmatprep.subr.mxu0 0.0
      %1300 = vmatpush1.msra.mxu0 0.0
      %1301 = vmatprep.subr.mxu0 0.0
      %1302 = vmatpush1.msra.mxu0 0.0
      %1303 = vmatprep.subr.mxu0 0.0
      %1304 = vmatpush1.msra.mxu0 0.0
      %1305 = vmatprep.subr.mxu0 0.0
      %1306 = vmatpush1.msra.mxu0 0.0
      %1307 = vmatprep.subr.mxu0 0.0
      %1308 = vmatpush1.msra.mxu0 0.0
      %1309 = vmatprep.subr.mxu0 0.0
      %1310 = vmatpush1.msra.mxu0 0.0
      %1311 = vmatprep.subr.mxu0 0.0
      %1312 = vmatpush1.msra.mxu0 0.0
      %1313 = vmatprep.subr.mxu0 0.0
      %1314 = vmatpush1.msra.mxu0 0.0
      %1315 = vmatprep.subr.mxu0 0.0
      %1316 = vmatpush1.msra.mxu0 0.0
      %1317 = vmatprep.mubr.f32.mxu0 0.0
      %1318 = vmatmul.mubr.f32.gmra.mrb[0].mxu0 %v1180
      %v1319 = vpop.f32.mrb[0].mxu0
      %v1320 = vadd.f32 0.0, %v1319
      %v1321 = vpop.f32.mrb[0].mxu0
      %v1322 = vadd.f32 0.0, %v1321
      %1323 = vdwg.mxu0
      %v1324 = vadd.f32 %v461, %v1249
      %v1325 = vadd.f32 %v463, %v1251
      %v1326 = vadd.f32 %v574, %v1320
      %v1327 = vadd.f32 %v576, %v1322
      %v1328 = vxor.u32 %v1324, 2147483648
      %v1329 = vmul.f32 %v1328, 1.442695
      %v1330 = vpow.pop %v1329
      %v1331 = vadd.f32 %v1330, 1.0
      %v1332 = vrcp.pop %v1331
      %v1333 = vmul.f32 1.0, %v1332
      %v1334 = vxor.u32 %v1325, 2147483648
      %v1335 = vmul.f32 %v1334, 1.442695
      %v1336 = vpow.pop %v1335
      %v1337 = vadd.f32 %v1336, 1.0
      %v1338 = vrcp.pop %v1337
      %v1339 = vmul.f32 1.0, %v1338
      %v1340 = vtanh.pop %v1326
      %v1341 = vxor.u32 %v1327, 2147483648
      %v1342 = vmul.f32 %v1341, 1.442695
      %v1343 = vpow.pop %v1342
      %v1344 = vadd.f32 %v1343, 1.0
      %v1345 = vrcp.pop %v1344
      %v1346 = vmul.f32 1.0, %v1345
      %v1347 = vmul.f32 %v1339, %v1178
      %v1348 = vmul.f32 %v1333, %v1340
      %v1349 = vadd.f32 %v1347, %v1348
      %v1350 = vtanh.pop %v1349
      %v1351 = vmul.f32 %v1346, %v1350
      %v1352 = vadd.f32 %v1181, %v1351
      %1353 = vmatprep.subr.mxu0 %v606
      %1354 = vmatpush1.msra.mxu0 %v605
      %1355 = vmatprep.subr.mxu0 %v610
      %1356 = vmatpush1.msra.mxu0 %v609
      %1357 = vmatprep.subr.mxu0 %v614
      %1358 = vmatpush1.msra.mxu0 %v613
      %1359 = vmatprep.subr.mxu0 %v618
      %1360 = vmatpush1.msra.mxu0 %v617
      %1361 = vmatprep.subr.mxu0 %v622
      %1362 = vmatpush1.msra.mxu0 %v621
      %1363 = vmatprep.subr.mxu0 %v626
      %1364 = vmatpush1.msra.mxu0 %v625
      %1365 = vmatprep.subr.mxu0 %v630
      %1366 = vmatpush1.msra.mxu0 %v629
      %1367 = vmatprep.subr.mxu0 %v634
      %1368 = vmatpush1.msra.mxu0 %v633
      %1369 = vmatprep.subr.mxu0 %v638
      %1370 = vmatpush1.msra.mxu0 %v637
      %1371 = vmatprep.subr.mxu0 %v642
      %1372 = vmatpush1.msra.mxu0 %v641
      %1373 = vmatprep.subr.mxu0 %v646
      %1374 = vmatpush1.msra.mxu0 %v645
      %1375 = vmatprep.subr.mxu0 %v650
      %1376 = vmatpush1.msra.mxu0 %v649
      %1377 = vmatprep.subr.mxu0 %v654
      %1378 = vmatpush1.msra.mxu0 %v653
      %1379 = vmatprep.subr.mxu0 %v658
      %1380 = vmatpush1.msra.mxu0 %v657
      %1381 = vmatprep.subr.mxu0 %v662
      %1382 = vmatpush1.msra.mxu0 %v661
      %1383 = vmatprep.subr.mxu0 %v666
      %1384 = vmatpush1.msra.mxu0 %v665
      %1385 = vmatprep.subr.mxu0 0.0
      %1386 = vmatpush1.msra.mxu0 0.0
      %1387 = vmatprep.subr.mxu0 0.0
      %1388 = vmatpush1.msra.mxu0 0.0
      %1389 = vmatprep.subr.mxu0 0.0
      %1390 = vmatpush1.msra.mxu0 0.0
      %1391 = vmatprep.subr.mxu0 0.0
      %1392 = vmatpush1.msra.mxu0 0.0
      %1393 = vmatprep.subr.mxu0 0.0
      %1394 = vmatpush1.msra.mxu0 0.0
      %1395 = vmatprep.subr.mxu0 0.0
      %1396 = vmatpush1.msra.mxu0 0.0
      %1397 = vmatprep.subr.mxu0 0.0
      %1398 = vmatpush1.msra.mxu0 0.0
      %1399 = vmatprep.subr.mxu0 0.0
      %1400 = vmatpush1.msra.mxu0 0.0
      %1401 = vmatprep.subr.mxu0 0.0
      %1402 = vmatpush1.msra.mxu0 0.0
      %1403 = vmatprep.subr.mxu0 0.0
      %1404 = vmatpush1.msra.mxu0 0.0
      %1405 = vmatprep.subr.mxu0 0.0
      %1406 = vmatpush1.msra.mxu0 0.0
      %1407 = vmatprep.subr.mxu0 0.0
      %1408 = vmatpush1.msra.mxu0 0.0
      %1409 = vmatprep.subr.mxu0 0.0
      %1410 = vmatpush1.msra.mxu0 0.0
      %1411 = vmatprep.subr.mxu0 0.0
      %1412 = vmatpush1.msra.mxu0 0.0
      %1413 = vmatprep.subr.mxu0 0.0
      %1414 = vmatpush1.msra.mxu0 0.0
      %1415 = vmatprep.subr.mxu0 0.0
      %1416 = vmatpush1.msra.mxu0 0.0
      %1417 = vmatprep.mubr.f32.mxu0 0.0
      %1418 = vmatmul.mubr.f32.gmra.mrb[0].mxu0 %v1351
      %v1419 = vpop.f32.mrb[0].mxu0
      %v1420 = vadd.f32 0.0, %v1419
      %v1421 = vpop.f32.mrb[0].mxu0
      %v1422 = vadd.f32 0.0, %v1421
      %1423 = vdwg.mxu0
      %1424 = vmatprep.subr.mxu0 %v608
      %1425 = vmatpush1.msra.mxu0 %v607
      %1426 = vmatprep.subr.mxu0 %v612
      %1427 = vmatpush1.msra.mxu0 %v611
      %1428 = vmatprep.subr.mxu0 %v616
      %1429 = vmatpush1.msra.mxu0 %v615
      %1430 = vmatprep.subr.mxu0 %v620
      %1431 = vmatpush1.msra.mxu0 %v619
      %1432 = vmatprep.subr.mxu0 %v624
      %1433 = vmatpush1.msra.mxu0 %v623
      %1434 = vmatprep.subr.mxu0 %v628
      %1435 = vmatpush1.msra.mxu0 %v627
      %1436 = vmatprep.subr.mxu0 %v632
      %1437 = vmatpush1.msra.mxu0 %v631
      %1438 = vmatprep.subr.mxu0 %v636
      %1439 = vmatpush1.msra.mxu0 %v635
      %1440 = vmatprep.subr.mxu0 %v640
      %1441 = vmatpush1.msra.mxu0 %v639
      %1442 = vmatprep.subr.mxu0 %v644
      %1443 = vmatpush1.msra.mxu0 %v643
      %1444 = vmatprep.subr.mxu0 %v648
      %1445 = vmatpush1.msra.mxu0 %v647
      %1446 = vmatprep.subr.mxu0 %v652
      %1447 = vmatpush1.msra.mxu0 %v651
      %1448 = vmatprep.subr.mxu0 %v656
      %1449 = vmatpush1.msra.mxu0 %v655
      %1450 = vmatprep.subr.mxu0 %v660
      %1451 = vmatpush1.msra.mxu0 %v659
      %1452 = vmatprep.subr.mxu0 %v664
      %1453 = vmatpush1.msra.mxu0 %v663
      %1454 = vmatprep.subr.mxu0 %v668
      %1455 = vmatpush1.msra.mxu0 %v667
      %1456 = vmatprep.subr.mxu0 0.0
      %1457 = vmatpush1.msra.mxu0 0.0
      %1458 = vmatprep.subr.mxu0 0.0
      %1459 = vmatpush1.msra.mxu0 0.0
      %1460 = vmatprep.subr.mxu0 0.0
      %1461 = vmatpush1.msra.mxu0 0.0
      %1462 = vmatprep.subr.mxu0 0.0
      %1463 = vmatpush1.msra.mxu0 0.0
      %1464 = vmatprep.subr.mxu0 0.0
      %1465 = vmatpush1.msra.mxu0 0.0
      %1466 = vmatprep.subr.mxu0 0.0
      %1467 = vmatpush1.msra.mxu0 0.0
      %1468 = vmatprep.subr.mxu0 0.0
      %1469 = vmatpush1.msra.mxu0 0.0
      %1470 = vmatprep.subr.mxu0 0.0
      %1471 = vmatpush1.msra.mxu0 0.0
      %1472 = vmatprep.subr.mxu0 0.0
      %1473 = vmatpush1.msra.mxu0 0.0
      %1474 = vmatprep.subr.mxu0 0.0
      %1475 = vmatpush1.msra.mxu0 0.0
      %1476 = vmatprep.subr.mxu0 0.0
      %1477 = vmatpush1.msra.mxu0 0.0
      %1478 = vmatprep.subr.mxu0 0.0
      %1479 = vmatpush1.msra.mxu0 0.0
      %1480 = vmatprep.subr.mxu0 0.0
      %1481 = vmatpush1.msra.mxu0 0.0
      %1482 = vmatprep.subr.mxu0 0.0
      %1483 = vmatpush1.msra.mxu0 0.0
      %1484 = vmatprep.subr.mxu0 0.0
      %1485 = vmatpush1.msra.mxu0 0.0
      %1486 = vmatprep.subr.mxu0 0.0
      %1487 = vmatpush1.msra.mxu0 0.0
      %1488 = vmatprep.mubr.f32.mxu0 0.0
      %1489 = vmatmul.mubr.f32.gmra.mrb[0].mxu0 %v1351
      %v1490 = vpop.f32.mrb[0].mxu0
      %v1491 = vadd.f32 0.0, %v1490
      %v1492 = vpop.f32.mrb[0].mxu0
      %v1493 = vadd.f32 0.0, %v1492
      %1494 = vdwg.mxu0
      %v1495 = vadd.f32 %v467, %v1420
      %v1496 = vadd.f32 %v469, %v1422
      %v1497 = vadd.f32 %v580, %v1491
      %v1498 = vadd.f32 %v582, %v1493
      %v1499 = vxor.u32 %v1495, 2147483648
      %v1500 = vmul.f32 %v1499, 1.442695
      %v1501 = vpow.pop %v1500
      %v1502 = vadd.f32 %v1501, 1.0
      %v1503 = vrcp.pop %v1502
      %v1504 = vmul.f32 1.0, %v1503
      %v1505 = vxor.u32 %v1496, 2147483648
      %v1506 = vmul.f32 %v1505, 1.442695
      %v1507 = vpow.pop %v1506
      %v1508 = vadd.f32 %v1507, 1.0
      %v1509 = vrcp.pop %v1508
      %v1510 = vmul.f32 1.0, %v1509
      %v1511 = vtanh.pop %v1497
      %v1512 = vxor.u32 %v1498, 2147483648
      %v1513 = vmul.f32 %v1512, 1.442695
      %v1514 = vpow.pop %v1513
      %v1515 = vadd.f32 %v1514, 1.0
      %v1516 = vrcp.pop %v1515
      %v1517 = vmul.f32 1.0, %v1516
      %v1518 = vmul.f32 %v1510, %v1349
      %v1519 = vmul.f32 %v1504, %v1511
      %v1520 = vadd.f32 %v1518, %v1519
      %v1521 = vtanh.pop %v1520
      %v1522 = vmul.f32 %v1517, %v1521
      %v1523 = vadd.f32 %v1352, %v1522
      %1524 = vmatprep.subr.mxu0 %v606
      %1525 = vmatpush1.msra.mxu0 %v605
      %1526 = vmatprep.subr.mxu0 %v610
      %1527 = vmatpush1.msra.mxu0 %v609
      %1528 = vmatprep.subr.mxu0 %v614
      %1529 = vmatpush1.msra.mxu0 %v613
      %1530 = vmatprep.subr.mxu0 %v618
      %1531 = vmatpush1.msra.mxu0 %v617
      %1532 = vmatprep.subr.mxu0 %v622
      %1533 = vmatpush1.msra.mxu0 %v621
      %1534 = vmatprep.subr.mxu0 %v626
      %1535 = vmatpush1.msra.mxu0 %v625
      %1536 = vmatprep.subr.mxu0 %v630
      %1537 = vmatpush1.msra.mxu0 %v629
      %1538 = vmatprep.subr.mxu0 %v634
      %1539 = vmatpush1.msra.mxu0 %v633
      %1540 = vmatprep.subr.mxu0 %v638
      %1541 = vmatpush1.msra.mxu0 %v637
      %1542 = vmatprep.subr.mxu0 %v642
      %1543 = vmatpush1.msra.mxu0 %v641
      %1544 = vmatprep.subr.mxu0 %v646
      %1545 = vmatpush1.msra.mxu0 %v645
      %1546 = vmatprep.subr.mxu0 %v650
      %1547 = vmatpush1.msra.mxu0 %v649
      %1548 = vmatprep.subr.mxu0 %v654
      %1549 = vmatpush1.msra.mxu0 %v653
      %1550 = vmatprep.subr.mxu0 %v658
      %1551 = vmatpush1.msra.mxu0 %v657
      %1552 = vmatprep.subr.mxu0 %v662
      %1553 = vmatpush1.msra.mxu0 %v661
      %1554 = vmatprep.subr.mxu0 %v666
      %1555 = vmatpush1.msra.mxu0 %v665
      %1556 = vmatprep.subr.mxu0 0.0
      %1557 = vmatpush1.msra.mxu0 0.0
      %1558 = vmatprep.subr.mxu0 0.0
      %1559 = vmatpush1.msra.mxu0 0.0
      %1560 = vmatprep.subr.mxu0 0.0
      %1561 = vmatpush1.msra.mxu0 0.0
      %1562 = vmatprep.subr.mxu0 0.0
      %1563 = vmatpush1.msra.mxu0 0.0
      %1564 = vmatprep.subr.mxu0 0.0
      %1565 = vmatpush1.msra.mxu0 0.0
      %1566 = vmatprep.subr.mxu0 0.0
      %1567 = vmatpush1.msra.mxu0 0.0
      %1568 = vmatprep.subr.mxu0 0.0
      %1569 = vmatpush1.msra.mxu0 0.0
      %1570 = vmatprep.subr.mxu0 0.0
      %1571 = vmatpush1.msra.mxu0 0.0
      %1572 = vmatprep.subr.mxu0 0.0
      %1573 = vmatpush1.msra.mxu0 0.0
      %1574 = vmatprep.subr.mxu0 0.0
      %1575 = vmatpush1.msra.mxu0 0.0
      %1576 = vmatprep.subr.mxu0 0.0
      %1577 = vmatpush1.msra.mxu0 0.0
      %1578 = vmatprep.subr.mxu0 0.0
      %1579 = vmatpush1.msra.mxu0 0.0
      %1580 = vmatprep.subr.mxu0 0.0
      %1581 = vmatpush1.msra.mxu0 0.0
      %1582 = vmatprep.subr.mxu0 0.0
      %1583 = vmatpush1.msra.mxu0 0.0
      %1584 = vmatprep.subr.mxu0 0.0
      %1585 = vmatpush1.msra.mxu0 0.0
      %1586 = vmatprep.subr.mxu0 0.0
      %1587 = vmatpush1.msra.mxu0 0.0
      %1588 = vmatprep.mubr.f32.mxu0 0.0
      %1589 = vmatmul.mubr.f32.gmra.mrb[0].mxu0 %v1522
      %v1590 = vpop.f32.mrb[0].mxu0
      %v1591 = vadd.f32 0.0, %v1590
      %v1592 = vpop.f32.mrb[0].mxu0
      %v1593 = vadd.f32 0.0, %v1592
      %1594 = vdwg.mxu0
      %1595 = vmatprep.subr.mxu0 %v608
      %1596 = vmatpush1.msra.mxu0 %v607
      %1597 = vmatprep.subr.mxu0 %v612
      %1598 = vmatpush1.msra.mxu0 %v611
      %1599 = vmatprep.subr.mxu0 %v616
      %1600 = vmatpush1.msra.mxu0 %v615
      %1601 = vmatprep.subr.mxu0 %v620
      %1602 = vmatpush1.msra.mxu0 %v619
      %1603 = vmatprep.subr.mxu0 %v624
      %1604 = vmatpush1.msra.mxu0 %v623
      %1605 = vmatprep.subr.mxu0 %v628
      %1606 = vmatpush1.msra.mxu0 %v627
      %1607 = vmatprep.subr.mxu0 %v632
      %1608 = vmatpush1.msra.mxu0 %v631
      %1609 = vmatprep.subr.mxu0 %v636
      %1610 = vmatpush1.msra.mxu0 %v635
      %1611 = vmatprep.subr.mxu0 %v640
      %1612 = vmatpush1.msra.mxu0 %v639
      %1613 = vmatprep.subr.mxu0 %v644
      %1614 = vmatpush1.msra.mxu0 %v643
      %1615 = vmatprep.subr.mxu0 %v648
      %1616 = vmatpush1.msra.mxu0 %v647
      %1617 = vmatprep.subr.mxu0 %v652
      %1618 = vmatpush1.msra.mxu0 %v651
      %1619 = vmatprep.subr.mxu0 %v656
      %1620 = vmatpush1.msra.mxu0 %v655
      %1621 = vmatprep.subr.mxu0 %v660
      %1622 = vmatpush1.msra.mxu0 %v659
      %1623 = vmatprep.subr.mxu0 %v664
      %1624 = vmatpush1.msra.mxu0 %v663
      %1625 = vmatprep.subr.mxu0 %v668
      %1626 = vmatpush1.msra.mxu0 %v667
      %1627 = vmatprep.subr.mxu0 0.0
      %1628 = vmatpush1.msra.mxu0 0.0
      %1629 = vmatprep.subr.mxu0 0.0
      %1630 = vmatpush1.msra.mxu0 0.0
      %1631 = vmatprep.subr.mxu0 0.0
      %1632 = vmatpush1.msra.mxu0 0.0
      %1633 = vmatprep.subr.mxu0 0.0
      %1634 = vmatpush1.msra.mxu0 0.0
      %1635 = vmatprep.subr.mxu0 0.0
      %1636 = vmatpush1.msra.mxu0 0.0
      %1637 = vmatprep.subr.mxu0 0.0
      %1638 = vmatpush1.msra.mxu0 0.0
      %1639 = vmatprep.subr.mxu0 0.0
      %1640 = vmatpush1.msra.mxu0 0.0
      %1641 = vmatprep.subr.mxu0 0.0
      %1642 = vmatpush1.msra.mxu0 0.0
      %1643 = vmatprep.subr.mxu0 0.0
      %1644 = vmatpush1.msra.mxu0 0.0
      %1645 = vmatprep.subr.mxu0 0.0
      %1646 = vmatpush1.msra.mxu0 0.0
      %1647 = vmatprep.subr.mxu0 0.0
      %1648 = vmatpush1.msra.mxu0 0.0
      %1649 = vmatprep.subr.mxu0 0.0
      %1650 = vmatpush1.msra.mxu0 0.0
      %1651 = vmatprep.subr.mxu0 0.0
      %1652 = vmatpush1.msra.mxu0 0.0
      %1653 = vmatprep.subr.mxu0 0.0
      %1654 = vmatpush1.msra.mxu0 0.0
      %1655 = vmatprep.subr.mxu0 0.0
      %1656 = vmatpush1.msra.mxu0 0.0
      %1657 = vmatprep.subr.mxu0 0.0
      %1658 = vmatpush1.msra.mxu0 0.0
      %1659 = vmatprep.mubr.f32.mxu0 0.0
      %1660 = vmatmul.mubr.f32.gmra.mrb[0].mxu0 %v1522
      %v1661 = vpop.f32.mrb[0].mxu0
      %v1662 = vadd.f32 0.0, %v1661
      %v1663 = vpop.f32.mrb[0].mxu0
      %v1664 = vadd.f32 0.0, %v1663
      %1665 = vdwg.mxu0
      %v1666 = vadd.f32 %v473, %v1591
      %v1667 = vadd.f32 %v475, %v1593
      %v1668 = vadd.f32 %v586, %v1662
      %v1669 = vadd.f32 %v588, %v1664
      %v1670 = vxor.u32 %v1666, 2147483648
      %v1671 = vmul.f32 %v1670, 1.442695
      %v1672 = vpow.pop %v1671
      %v1673 = vadd.f32 %v1672, 1.0
      %v1674 = vrcp.pop %v1673
      %v1675 = vmul.f32 1.0, %v1674
      %v1676 = vxor.u32 %v1667, 2147483648
      %v1677 = vmul.f32 %v1676, 1.442695
      %v1678 = vpow.pop %v1677
      %v1679 = vadd.f32 %v1678, 1.0
      %v1680 = vrcp.pop %v1679
      %v1681 = vmul.f32 1.0, %v1680
      %v1682 = vtanh.pop %v1668
      %v1683 = vxor.u32 %v1669, 2147483648
      %v1684 = vmul.f32 %v1683, 1.442695
      %v1685 = vpow.pop %v1684
      %v1686 = vadd.f32 %v1685, 1.0
      %v1687 = vrcp.pop %v1686
      %v1688 = vmul.f32 1.0, %v1687
      %v1689 = vmul.f32 %v1681, %v1520
      %v1690 = vmul.f32 %v1675, %v1682
      %v1691 = vadd.f32 %v1689, %v1690
      %v1692 = vtanh.pop %v1691
      %v1693 = vmul.f32 %v1688, %v1692
      %v1694 = vadd.f32 %v1523, %v1693
      %1695 = vmatprep.subr.mxu0 %v606
      %1696 = vmatpush1.msra.mxu0 %v605
      %1697 = vmatprep.subr.mxu0 %v610
      %1698 = vmatpush1.msra.mxu0 %v609
      %1699 = vmatprep.subr.mxu0 %v614
      %1700 = vmatpush1.msra.mxu0 %v613
      %1701 = vmatprep.subr.mxu0 %v618
      %1702 = vmatpush1.msra.mxu0 %v617
      %1703 = vmatprep.subr.mxu0 %v622
      %1704 = vmatpush1.msra.mxu0 %v621
      %1705 = vmatprep.subr.mxu0 %v626
      %1706 = vmatpush1.msra.mxu0 %v625
      %1707 = vmatprep.subr.mxu0 %v630
      %1708 = vmatpush1.msra.mxu0 %v629
      %1709 = vmatprep.subr.mxu0 %v634
      %1710 = vmatpush1.msra.mxu0 %v633
      %1711 = vmatprep.subr.mxu0 %v638
      %1712 = vmatpush1.msra.mxu0 %v637
      %1713 = vmatprep.subr.mxu0 %v642
      %1714 = vmatpush1.msra.mxu0 %v641
      %1715 = vmatprep.subr.mxu0 %v646
      %1716 = vmatpush1.msra.mxu0 %v645
      %1717 = vmatprep.subr.mxu0 %v650
      %1718 = vmatpush1.msra.mxu0 %v649
      %1719 = vmatprep.subr.mxu0 %v654
      %1720 = vmatpush1.msra.mxu0 %v653
      %1721 = vmatprep.subr.mxu0 %v658
      %1722 = vmatpush1.msra.mxu0 %v657
      %1723 = vmatprep.subr.mxu0 %v662
      %1724 = vmatpush1.msra.mxu0 %v661
      %1725 = vmatprep.subr.mxu0 %v666
      %1726 = vmatpush1.msra.mxu0 %v665
      %1727 = vmatprep.subr.mxu0 0.0
      %1728 = vmatpush1.msra.mxu0 0.0
      %1729 = vmatprep.subr.mxu0 0.0
      %1730 = vmatpush1.msra.mxu0 0.0
      %1731 = vmatprep.subr.mxu0 0.0
      %1732 = vmatpush1.msra.mxu0 0.0
      %1733 = vmatprep.subr.mxu0 0.0
      %1734 = vmatpush1.msra.mxu0 0.0
      %1735 = vmatprep.subr.mxu0 0.0
      %1736 = vmatpush1.msra.mxu0 0.0
      %1737 = vmatprep.subr.mxu0 0.0
      %1738 = vmatpush1.msra.mxu0 0.0
      %1739 = vmatprep.subr.mxu0 0.0
      %1740 = vmatpush1.msra.mxu0 0.0
      %1741 = vmatprep.subr.mxu0 0.0
      %1742 = vmatpush1.msra.mxu0 0.0
      %1743 = vmatprep.subr.mxu0 0.0
      %1744 = vmatpush1.msra.mxu0 0.0
      %1745 = vmatprep.subr.mxu0 0.0
      %1746 = vmatpush1.msra.mxu0 0.0
      %1747 = vmatprep.subr.mxu0 0.0
      %1748 = vmatpush1.msra.mxu0 0.0
      %1749 = vmatprep.subr.mxu0 0.0
      %1750 = vmatpush1.msra.mxu0 0.0
      %1751 = vmatprep.subr.mxu0 0.0
      %1752 = vmatpush1.msra.mxu0 0.0
      %1753 = vmatprep.subr.mxu0 0.0
      %1754 = vmatpush1.msra.mxu0 0.0
      %1755 = vmatprep.subr.mxu0 0.0
      %1756 = vmatpush1.msra.mxu0 0.0
      %1757 = vmatprep.subr.mxu0 0.0
      %1758 = vmatpush1.msra.mxu0 0.0
      %1759 = vmatprep.mubr.f32.mxu0 0.0
      %1760 = vmatmul.mubr.f32.gmra.mrb[0].mxu0 %v1693
      %v1761 = vpop.f32.mrb[0].mxu0
      %v1762 = vadd.f32 0.0, %v1761
      %v1763 = vpop.f32.mrb[0].mxu0
      %v1764 = vadd.f32 0.0, %v1763
      %1765 = vdwg.mxu0
      %1766 = vmatprep.subr.mxu0 %v608
      %1767 = vmatpush1.msra.mxu0 %v607
      %1768 = vmatprep.subr.mxu0 %v612
      %1769 = vmatpush1.msra.mxu0 %v611
      %1770 = vmatprep.subr.mxu0 %v616
      %1771 = vmatpush1.msra.mxu0 %v615
      %1772 = vmatprep.subr.mxu0 %v620
      %1773 = vmatpush1.msra.mxu0 %v619
      %1774 = vmatprep.subr.mxu0 %v624
      %1775 = vmatpush1.msra.mxu0 %v623
      %1776 = vmatprep.subr.mxu0 %v628
      %1777 = vmatpush1.msra.mxu0 %v627
      %1778 = vmatprep.subr.mxu0 %v632
      %1779 = vmatpush1.msra.mxu0 %v631
      %1780 = vmatprep.subr.mxu0 %v636
      %1781 = vmatpush1.msra.mxu0 %v635
      %1782 = vmatprep.subr.mxu0 %v640
      %1783 = vmatpush1.msra.mxu0 %v639
      %1784 = vmatprep.subr.mxu0 %v644
      %1785 = vmatpush1.msra.mxu0 %v643
      %1786 = vmatprep.subr.mxu0 %v648
      %1787 = vmatpush1.msra.mxu0 %v647
      %1788 = vmatprep.subr.mxu0 %v652
      %1789 = vmatpush1.msra.mxu0 %v651
      %1790 = vmatprep.subr.mxu0 %v656
      %1791 = vmatpush1.msra.mxu0 %v655
      %1792 = vmatprep.subr.mxu0 %v660
      %1793 = vmatpush1.msra.mxu0 %v659
      %1794 = vmatprep.subr.mxu0 %v664
      %1795 = vmatpush1.msra.mxu0 %v663
      %1796 = vmatprep.subr.mxu0 %v668
      %1797 = vmatpush1.msra.mxu0 %v667
      %1798 = vmatprep.subr.mxu0 0.0
      %1799 = vmatpush1.msra.mxu0 0.0
      %1800 = vmatprep.subr.mxu0 0.0
      %1801 = vmatpush1.msra.mxu0 0.0
      %1802 = vmatprep.subr.mxu0 0.0
      %1803 = vmatpush1.msra.mxu0 0.0
      %1804 = vmatprep.subr.mxu0 0.0
      %1805 = vmatpush1.msra.mxu0 0.0
      %1806 = vmatprep.subr.mxu0 0.0
      %1807 = vmatpush1.msra.mxu0 0.0
      %1808 = vmatprep.subr.mxu0 0.0
      %1809 = vmatpush1.msra.mxu0 0.0
      %1810 = vmatprep.subr.mxu0 0.0
      %1811 = vmatpush1.msra.mxu0 0.0
      %1812 = vmatprep.subr.mxu0 0.0
      %1813 = vmatpush1.msra.mxu0 0.0
      %1814 = vmatprep.subr.mxu0 0.0
      %1815 = vmatpush1.msra.mxu0 0.0
      %1816 = vmatprep.subr.mxu0 0.0
      %1817 = vmatpush1.msra.mxu0 0.0
      %1818 = vmatprep.subr.mxu0 0.0
      %1819 = vmatpush1.msra.mxu0 0.0
      %1820 = vmatprep.subr.mxu0 0.0
      %1821 = vmatpush1.msra.mxu0 0.0
      %1822 = vmatprep.subr.mxu0 0.0
      %1823 = vmatpush1.msra.mxu0 0.0
      %1824 = vmatprep.subr.mxu0 0.0
      %1825 = vmatpush1.msra.mxu0 0.0
      %1826 = vmatprep.subr.mxu0 0.0
      %1827 = vmatpush1.msra.mxu0 0.0
      %1828 = vmatprep.subr.mxu0 0.0
      %1829 = vmatpush1.msra.mxu0 0.0
      %1830 = vmatprep.mubr.f32.mxu0 0.0
      %1831 = vmatmul.mubr.f32.gmra.mrb[0].mxu0 %v1693
      %v1832 = vpop.f32.mrb[0].mxu0
      %v1833 = vadd.f32 0.0, %v1832
      %v1834 = vpop.f32.mrb[0].mxu0
      %v1835 = vadd.f32 0.0, %v1834
      %1836 = vdwg.mxu0
      %v1837 = vadd.f32 %v479, %v1762
      %v1838 = vadd.f32 %v481, %v1764
      %v1839 = vadd.f32 %v592, %v1833
      %v1840 = vadd.f32 %v594, %v1835
      %v1841 = vxor.u32 %v1837, 2147483648
      %v1842 = vmul.f32 %v1841, 1.442695
      %v1843 = vpow.pop %v1842
      %v1844 = vadd.f32 %v1843, 1.0
      %v1845 = vrcp.pop %v1844
      %v1846 = vmul.f32 1.0, %v1845
      %v1847 = vxor.u32 %v1838, 2147483648
      %v1848 = vmul.f32 %v1847, 1.442695
      %v1849 = vpow.pop %v1848
      %v1850 = vadd.f32 %v1849, 1.0
      %v1851 = vrcp.pop %v1850
      %v1852 = vmul.f32 1.0, %v1851
      %v1853 = vtanh.pop %v1839
      %v1854 = vxor.u32 %v1840, 2147483648
      %v1855 = vmul.f32 %v1854, 1.442695
      %v1856 = vpow.pop %v1855
      %v1857 = vadd.f32 %v1856, 1.0
      %v1858 = vrcp.pop %v1857
      %v1859 = vmul.f32 1.0, %v1858
      %v1860 = vmul.f32 %v1852, %v1691
      %v1861 = vmul.f32 %v1846, %v1853
      %v1862 = vadd.f32 %v1860, %v1861
      %v1863 = vtanh.pop %v1862
      %v1864 = vmul.f32 %v1859, %v1863
      %v1865 = vadd.f32 %v1694, %v1864
      %1866 = vmatprep.subr.mxu0 %v606
      %1867 = vmatpush1.msra.mxu0 %v605
      %1868 = vmatprep.subr.mxu0 %v610
      %1869 = vmatpush1.msra.mxu0 %v609
      %1870 = vmatprep.subr.mxu0 %v614
      %1871 = vmatpush1.msra.mxu0 %v613
      %1872 = vmatprep.subr.mxu0 %v618
      %1873 = vmatpush1.msra.mxu0 %v617
      %1874 = vmatprep.subr.mxu0 %v622
      %1875 = vmatpush1.msra.mxu0 %v621
      %1876 = vmatprep.subr.mxu0 %v626
      %1877 = vmatpush1.msra.mxu0 %v625
      %1878 = vmatprep.subr.mxu0 %v630
      %1879 = vmatpush1.msra.mxu0 %v629
      %1880 = vmatprep.subr.mxu0 %v634
      %1881 = vmatpush1.msra.mxu0 %v633
      %1882 = vmatprep.subr.mxu0 %v638
      %1883 = vmatpush1.msra.mxu0 %v637
      %1884 = vmatprep.subr.mxu0 %v642
      %1885 = vmatpush1.msra.mxu0 %v641
      %1886 = vmatprep.subr.mxu0 %v646
      %1887 = vmatpush1.msra.mxu0 %v645
      %1888 = vmatprep.subr.mxu0 %v650
      %1889 = vmatpush1.msra.mxu0 %v649
      %1890 = vmatprep.subr.mxu0 %v654
      %1891 = vmatpush1.msra.mxu0 %v653
      %1892 = vmatprep.subr.mxu0 %v658
      %1893 = vmatpush1.msra.mxu0 %v657
      %1894 = vmatprep.subr.mxu0 %v662
      %1895 = vmatpush1.msra.mxu0 %v661
      %1896 = vmatprep.subr.mxu0 %v666
      %1897 = vmatpush1.msra.mxu0 %v665
      %1898 = vmatprep.subr.mxu0 0.0
      %1899 = vmatpush1.msra.mxu0 0.0
      %1900 = vmatprep.subr.mxu0 0.0
      %1901 = vmatpush1.msra.mxu0 0.0
      %1902 = vmatprep.subr.mxu0 0.0
      %1903 = vmatpush1.msra.mxu0 0.0
      %1904 = vmatprep.subr.mxu0 0.0
      %1905 = vmatpush1.msra.mxu0 0.0
      %1906 = vmatprep.subr.mxu0 0.0
      %1907 = vmatpush1.msra.mxu0 0.0
      %1908 = vmatprep.subr.mxu0 0.0
      %1909 = vmatpush1.msra.mxu0 0.0
      %1910 = vmatprep.subr.mxu0 0.0
      %1911 = vmatpush1.msra.mxu0 0.0
      %1912 = vmatprep.subr.mxu0 0.0
      %1913 = vmatpush1.msra.mxu0 0.0
      %1914 = vmatprep.subr.mxu0 0.0
      %1915 = vmatpush1.msra.mxu0 0.0
      %1916 = vmatprep.subr.mxu0 0.0
      %1917 = vmatpush1.msra.mxu0 0.0
      %1918 = vmatprep.subr.mxu0 0.0
      %1919 = vmatpush1.msra.mxu0 0.0
      %1920 = vmatprep.subr.mxu0 0.0
      %1921 = vmatpush1.msra.mxu0 0.0
      %1922 = vmatprep.subr.mxu0 0.0
      %1923 = vmatpush1.msra.mxu0 0.0
      %1924 = vmatprep.subr.mxu0 0.0
      %1925 = vmatpush1.msra.mxu0 0.0
      %1926 = vmatprep.subr.mxu0 0.0
      %1927 = vmatpush1.msra.mxu0 0.0
      %1928 = vmatprep.subr.mxu0 0.0
      %1929 = vmatpush1.msra.mxu0 0.0
      %1930 = vmatprep.mubr.f32.mxu0 0.0
      %1931 = vmatmul.mubr.f32.gmra.mrb[0].mxu0 %v1864
      %v1932 = vpop.f32.mrb[0].mxu0
      %v1933 = vadd.f32 0.0, %v1932
      %v1934 = vpop.f32.mrb[0].mxu0
      %v1935 = vadd.f32 0.0, %v1934
      %1936 = vdwg.mxu0
      %1937 = vmatprep.subr.mxu0 %v608
      %1938 = vmatpush1.msra.mxu0 %v607
      %1939 = vmatprep.subr.mxu0 %v612
      %1940 = vmatpush1.msra.mxu0 %v611
      %1941 = vmatprep.subr.mxu0 %v616
      %1942 = vmatpush1.msra.mxu0 %v615
      %1943 = vmatprep.subr.mxu0 %v620
      %1944 = vmatpush1.msra.mxu0 %v619
      %1945 = vmatprep.subr.mxu0 %v624
      %1946 = vmatpush1.msra.mxu0 %v623
      %1947 = vmatprep.subr.mxu0 %v628
      %1948 = vmatpush1.msra.mxu0 %v627
      %1949 = vmatprep.subr.mxu0 %v632
      %1950 = vmatpush1.msra.mxu0 %v631
      %1951 = vmatprep.subr.mxu0 %v636
      %1952 = vmatpush1.msra.mxu0 %v635
      %1953 = vmatprep.subr.mxu0 %v640
      %1954 = vmatpush1.msra.mxu0 %v639
      %1955 = vmatprep.subr.mxu0 %v644
      %1956 = vmatpush1.msra.mxu0 %v643
      %1957 = vmatprep.subr.mxu0 %v648
      %1958 = vmatpush1.msra.mxu0 %v647
      %1959 = vmatprep.subr.mxu0 %v652
      %1960 = vmatpush1.msra.mxu0 %v651
      %1961 = vmatprep.subr.mxu0 %v656
      %1962 = vmatpush1.msra.mxu0 %v655
      %1963 = vmatprep.subr.mxu0 %v660
      %1964 = vmatpush1.msra.mxu0 %v659
      %1965 = vmatprep.subr.mxu0 %v664
      %1966 = vmatpush1.msra.mxu0 %v663
      %1967 = vmatprep.subr.mxu0 %v668
      %1968 = vmatpush1.msra.mxu0 %v667
      %1969 = vmatprep.subr.mxu0 0.0
      %1970 = vmatpush1.msra.mxu0 0.0
      %1971 = vmatprep.subr.mxu0 0.0
      %1972 = vmatpush1.msra.mxu0 0.0
      %1973 = vmatprep.subr.mxu0 0.0
      %1974 = vmatpush1.msra.mxu0 0.0
      %1975 = vmatprep.subr.mxu0 0.0
      %1976 = vmatpush1.msra.mxu0 0.0
      %1977 = vmatprep.subr.mxu0 0.0
      %1978 = vmatpush1.msra.mxu0 0.0
      %1979 = vmatprep.subr.mxu0 0.0
      %1980 = vmatpush1.msra.mxu0 0.0
      %1981 = vmatprep.subr.mxu0 0.0
      %1982 = vmatpush1.msra.mxu0 0.0
      %1983 = vmatprep.subr.mxu0 0.0
      %1984 = vmatpush1.msra.mxu0 0.0
      %1985 = vmatprep.subr.mxu0 0.0
      %1986 = vmatpush1.msra.mxu0 0.0
      %1987 = vmatprep.subr.mxu0 0.0
      %1988 = vmatpush1.msra.mxu0 0.0
      %1989 = vmatprep.subr.mxu0 0.0
      %1990 = vmatpush1.msra.mxu0 0.0
      %1991 = vmatprep.subr.mxu0 0.0
      %1992 = vmatpush1.msra.mxu0 0.0
      %1993 = vmatprep.subr.mxu0 0.0
      %1994 = vmatpush1.msra.mxu0 0.0
      %1995 = vmatprep.subr.mxu0 0.0
      %1996 = vmatpush1.msra.mxu0 0.0
      %1997 = vmatprep.subr.mxu0 0.0
      %1998 = vmatpush1.msra.mxu0 0.0
      %1999 = vmatprep.subr.mxu0 0.0
      %2000 = vmatpush1.msra.mxu0 0.0
      %2001 = vmatprep.mubr.f32.mxu0 0.0
      %2002 = vmatmul.mubr.f32.gmra.mrb[0].mxu0 %v1864
      %v2003 = vpop.f32.mrb[0].mxu0
      %v2004 = vadd.f32 0.0, %v2003
      %v2005 = vpop.f32.mrb[0].mxu0
      %v2006 = vadd.f32 0.0, %v2005
      %2007 = vdwg.mxu0
      %v2008 = vadd.f32 %v485, %v1933
      %v2009 = vadd.f32 %v487, %v1935
      %v2010 = vadd.f32 %v598, %v2004
      %v2011 = vadd.f32 %v600, %v2006
      %v2012 = vxor.u32 %v2008, 2147483648
      %v2013 = vmul.f32 %v2012, 1.442695
      %v2014 = vpow.pop %v2013
      %v2015 = vadd.f32 %v2014, 1.0
      %v2016 = vrcp.pop %v2015
      %v2017 = vmul.f32 1.0, %v2016
      %v2018 = vxor.u32 %v2009, 2147483648
      %v2019 = vmul.f32 %v2018, 1.442695
      %v2020 = vpow.pop %v2019
      %v2021 = vadd.f32 %v2020, 1.0
      %v2022 = vrcp.pop %v2021
      %v2023 = vmul.f32 1.0, %v2022
      %v2024 = vtanh.pop %v2010
      %v2025 = vxor.u32 %v2011, 2147483648
      %v2026 = vmul.f32 %v2025, 1.442695
      %v2027 = vpow.pop %v2026
      %v2028 = vadd.f32 %v2027, 1.0
      %v2029 = vrcp.pop %v2028
      %v2030 = vmul.f32 1.0, %v2029
      %v2031 = vmul.f32 %v2023, %v1862
      %v2032 = vmul.f32 %v2017, %v2024
      %v2033 = vadd.f32 %v2031, %v2032
      %v2034 = vtanh.pop %v2033
      %v2035 = vmul.f32 %v2030, %v2034
      %v2036 = vadd.f32 %v1865, %v2035
      %2037 = vst [vmem:[#allocation2] sm:$0xff] %v2035
      %2038 = vst [vmem:[#allocation3] sm:$0xff] %v2033
      %2039 = vst [vmem:[#allocation4] sm:$0xff] %v2036
      %p2040 = scmp.eq.s32.totalorder %s22, 2
      // Predicated region
      $region49: #{lstm_net_forward.1} parent=43 // pred_check
        %p2041 = pneg %p2040
      $region50: #{lstm_net_forward.1} parent=43 // pred_check_branch
        %2043 = sbr.rel (%p2041) target = $region52
      $region51: #{lstm_net_forward.1} parent=43 // pred_region
        %v2044 = vld [vmem:[#allocation4] sm:$0xff]
        %v2045 = vmul.f32 %v2044, 0.041666668
        %v2046 = vld [vmem:[%s4] sm:$0xff]
        %v2047 = vld [vmem:[%s4 + $0x8] sm:$0xff]
        %v2048 = vld [vmem:[%s4 + $0x10] sm:$0xff]
        %v2049 = vld [vmem:[%s4 + $0x18] sm:$0xff]
        %v2050 = vld [vmem:[%s4 + $0x20] sm:$0xff]
        %v2051 = vld [vmem:[%s4 + $0x28] sm:$0xff]
        %v2052 = vld [vmem:[%s4 + $0x30] sm:$0xff]
        %v2053 = vld [vmem:[%s4 + $0x38] sm:$0xff]
        %v2054 = vld [vmem:[%s4 + $0x40] sm:$0xff]
        %v2055 = vld [vmem:[%s4 + $0x48] sm:$0xff]
        %v2056 = vld [vmem:[%s4 + $0x50] sm:$0xff]
        %v2057 = vld [vmem:[%s4 + $0x58] sm:$0xff]
        %v2058 = vld [vmem:[%s4 + $0x60] sm:$0xff]
        %v2059 = vld [vmem:[%s4 + $0x68] sm:$0xff]
        %v2060 = vld [vmem:[%s4 + $0x70] sm:$0xff]
        %v2061 = vld [vmem:[%s4 + $0x78] sm:$0xff]
        %v2062 = vld [vmem:[%s5] sm:$0x1]
        %v2064 = vlaneseq
        %v2065 = vshrl.u32 %v2064, 7
        %v2066 = vsub.s32 0, %v2065
        %v2067 = vrot.slane %v2062, %v2066
        %2069 = vmatprep.subr.mxu0 0.0
        %2070 = vmatpush1.msra.mxu0 %v2046
        %2071 = vmatprep.subr.mxu0 0.0
        %2072 = vmatpush1.msra.mxu0 %v2047
        %2073 = vmatprep.subr.mxu0 0.0
        %2074 = vmatpush1.msra.mxu0 %v2048
        %2075 = vmatprep.subr.mxu0 0.0
        %2076 = vmatpush1.msra.mxu0 %v2049
        %2077 = vmatprep.subr.mxu0 0.0
        %2078 = vmatpush1.msra.mxu0 %v2050
        %2079 = vmatprep.subr.mxu0 0.0
        %2080 = vmatpush1.msra.mxu0 %v2051
        %2081 = vmatprep.subr.mxu0 0.0
        %2082 = vmatpush1.msra.mxu0 %v2052
        %2083 = vmatprep.subr.mxu0 0.0
        %2084 = vmatpush1.msra.mxu0 %v2053
        %2085 = vmatprep.subr.mxu0 0.0
        %2086 = vmatpush1.msra.mxu0 %v2054
        %2087 = vmatprep.subr.mxu0 0.0
        %2088 = vmatpush1.msra.mxu0 %v2055
        %2089 = vmatprep.subr.mxu0 0.0
        %2090 = vmatpush1.msra.mxu0 %v2056
        %2091 = vmatprep.subr.mxu0 0.0
        %2092 = vmatpush1.msra.mxu0 %v2057
        %2093 = vmatprep.subr.mxu0 0.0
        %2094 = vmatpush1.msra.mxu0 %v2058
        %2095 = vmatprep.subr.mxu0 0.0
        %2096 = vmatpush1.msra.mxu0 %v2059
        %2097 = vmatprep.subr.mxu0 0.0
        %2098 = vmatpush1.msra.mxu0 %v2060
        %2099 = vmatprep.subr.mxu0 0.0
        %2100 = vmatpush1.msra.mxu0 %v2061
        %2101 = vmatprep.subr.mxu0 0.0
        %2102 = vmatpush1.msra.mxu0 0.0
        %2103 = vmatprep.subr.mxu0 0.0
        %2104 = vmatpush1.msra.mxu0 0.0
        %2105 = vmatprep.subr.mxu0 0.0
        %2106 = vmatpush1.msra.mxu0 0.0
        %2107 = vmatprep.subr.mxu0 0.0
        %2108 = vmatpush1.msra.mxu0 0.0
        %2109 = vmatprep.subr.mxu0 0.0
        %2110 = vmatpush1.msra.mxu0 0.0
        %2111 = vmatprep.subr.mxu0 0.0
        %2112 = vmatpush1.msra.mxu0 0.0
        %2113 = vmatprep.subr.mxu0 0.0
        %2114 = vmatpush1.msra.mxu0 0.0
        %2115 = vmatprep.subr.mxu0 0.0
        %2116 = vmatpush1.msra.mxu0 0.0
        %2117 = vmatprep.subr.mxu0 0.0
        %2118 = vmatpush1.msra.mxu0 0.0
        %2119 = vmatprep.subr.mxu0 0.0
        %2120 = vmatpush1.msra.mxu0 0.0
        %2121 = vmatprep.subr.mxu0 0.0
        %2122 = vmatpush1.msra.mxu0 0.0
        %2123 = vmatprep.subr.mxu0 0.0
        %2124 = vmatpush1.msra.mxu0 0.0
        %2125 = vmatprep.subr.mxu0 0.0
        %2126 = vmatpush1.msra.mxu0 0.0
        %2127 = vmatprep.subr.mxu0 0.0
        %2128 = vmatpush1.msra.mxu0 0.0
        %2129 = vmatprep.subr.mxu0 0.0
        %2130 = vmatpush1.msra.mxu0 0.0
        %2131 = vmatprep.subr.mxu0 0.0
        %2132 = vmatpush1.msra.mxu0 0.0
        %2133 = vmatprep.mubr.f32.mxu0 0.0
        %2134 = vmatmul.mubr.f32.gmra.mrb[0].mxu0 %v2045
        %v2135 = vpop.f32.mrb[0].mxu0
        %v2136 = vadd.f32 %v2067, %v2135
        %v2137 = vpop.f32.mrb[0].mxu0
        %2138 = vdwg.mxu0
        %2139 = vst [vmem:[%s274] sm:$0xff] %v2136
      $region52: #{lstm_net_forward.1} parent=43 // pred_fallthru
        _
      %p2140 = scmp.lt.s32.totalorder %s21, 0
      %s2141 = scalar_select %p2140, %s21, 0
      %s2142 = smul.addr %s2141, 8
      %s2143 = scalar_lea.vmem %s6, %s2142
      // Predicated region
      $region53: #{lstm_net_forward.1} parent=43 // pred_check
        %p2144 = pneg %p180
      $region54: #{lstm_net_forward.1} parent=43 // pred_check_branch
        %2146 = sbr.rel (%p2144) target = $region56
      $region55: #{lstm_net_forward.1} parent=43 // pred_region
        _
      $region56: #{lstm_net_forward.1} parent=43 // pred_fallthru
        _
      // Predicated region
      $region57: #{lstm_net_forward.1} parent=43 // pred_check
        %p2147 = pneg %p180
      $region58: #{lstm_net_forward.1} parent=43 // pred_check_branch
        %2149 = sbr.rel (%p2147) target = $region60
      $region59: #{lstm_net_forward.1} parent=43 // pred_region
        %p2150 = scmp.lt.s32.totalorder %s21, 0
        %s2151 = scalar_select %p2150, %s21, 0
        %s2152 = smul.addr %s2151, 8
        %s2153 = scalar_lea.vmem %s6, %s2152
      $region60: #{lstm_net_forward.1} parent=43 // pred_fallthru
        _
    $region44: #{lstm_net_forward.1} parent=5 // pred_fallthru
      _
    %p2154 = scmp.le.s32.totalorder 2, %s12
    // Predicated region
    $region61: #{lstm_net_forward.1} parent=5 // pred_check
      %p2155 = pneg %p2154
    $region62: #{lstm_net_forward.1} parent=5 // pred_check_branch
      %2157 = sbr.rel (%p2155) target = $region64
    $region63: #{lstm_net_forward.1} parent=5 // pred_region
      %s2158 = ssub.s32 %s12, 2
    $region64: #{lstm_net_forward.1} parent=5 // pred_fallthru
      _
  $region6: #{lstm_net_forward.1} parent=0 // loop_footer
    %s16 = sadd.s32 1, %s12
  $region7: #{lstm_net_forward.1} parent=0 // loop_footer_branch
    %11 = sbr.rel target = $region3
  $region8: #{lstm_net_forward.1} parent=0 // loop_exit
    _

</llo_original>
